<compile_context>
chip_gen: v7x
topology: tpu7x:2x2x1
jax: 0.10.0
libtpu: 0.0.40
codegen_flags: <defaults>
</compile_context>

<pallas_src>
import jax
import jax.numpy as jnp
import numpy as np
from jax.experimental import pallas as pl
from jax.experimental.pallas import tpu as pltpu


# --------------------------- fused RNN + FC kernel ----------------------------
def make_fused_rnn_kernel(layer_dim, S, B, D, H, O):
    """Builds the kernel body for fixed static shapes / layer count.

    Ref layout (positional):
      x_ref      : (S*B, D)   time-major input, flattened over (time, batch)
      h0_ref     : (L, B, H)  initial hidden state per layer
      per layer l: wih_ref (D_in, H), whh_ref (H, H), b_ref (1, H)   [b = b_ih + b_hh]
      fc_w_ref   : (H, O)
      fc_b_ref   : (1, O)
      out_ref    : (B, O)     the only HBM output
      seq_ref    : VMEM (S*B, H) scratch holding the previous layer's full sequence
    """

    def kernel(*refs):
        x_ref = refs[0]
        h0_ref = refs[1]
        layer_refs = refs[2:2 + 3 * layer_dim]
        fc_w_ref = refs[2 + 3 * layer_dim]
        fc_b_ref = refs[3 + 3 * layer_dim]
        out_ref = refs[4 + 3 * layer_dim]
        seq_ref = refs[5 + 3 * layer_dim]

        h_last = None
        for l in range(layer_dim):
            wih_ref = layer_refs[3 * l + 0]
            whh_ref = layer_refs[3 * l + 1]
            b_ref = layer_refs[3 * l + 2]

            # Input to this layer: original x for layer 0, previous layer's
            # sequence (held in VMEM scratch) otherwise.
            if l == 0:
                inp_flat = x_ref[...]                 # (S*B, D)
            else:
                inp_flat = seq_ref[...]               # (S*B, H)

            # Hoisted, time-independent input projection + bias: one MXU matmul
            # over all timesteps instead of S tiny ones on the serial path.
            p = jnp.dot(inp_flat, wih_ref[...],
                        preferred_element_type=jnp.float32) + b_ref[...]  # (S*B, H)

            whh = whh_ref[...]                        # (H, H), loaded once
            h = h0_ref[l]                             # (B, H)
            write_seq = l < layer_dim - 1             # last layer only needs h_T

            # Fully unrolled recurrence (S is a small static constant).
            for t in range(S):
                pre = p[t * B:(t + 1) * B, :] + jnp.dot(
                    h, whh, preferred_element_type=jnp.float32)
                h = jnp.maximum(pre, 0.0)             # relu nonlinearity
                if write_seq:
                    seq_ref[pl.ds(t * B, B), :] = h   # stays in VMEM, never hits HBM

            h_last = h

        # Final Linear on the last timestep of the last layer; single small store.
        out_ref[...] = jnp.dot(h_last, fc_w_ref[...],
                               preferred_element_type=jnp.float32) + fc_b_ref[...]

    return kernel


# ------------------------------ Full model -----------------------------------
def rnn_model_forward(x, params, h0):
    """x: (B, S, input_dim) batch-first, like the PyTorch module. Returns (B, O)."""
    B, S, D = x.shape
    L, _, H = h0.shape
    O = params["fc_w_t"].shape[1]

    # Time-major, flattened over (time, batch) so the kernel can do one big
    # input-projection matmul per layer. Cheap XLA reshuffle on a tiny array.
    x_flat = jnp.transpose(x, (1, 0, 2)).reshape(S * B, D).astype(jnp.float32)

    flat_inputs = [x_flat, h0.astype(jnp.float32)]
    in_specs = [
        pl.BlockSpec((S * B, D), lambda: (0, 0)),
        pl.BlockSpec((L, B, H), lambda: (0, 0, 0)),
    ]
    for (wih_t, whh_t, b) in params["rnn"]:
        d_in = wih_t.shape[0]
        flat_inputs += [wih_t, whh_t, b]
        in_specs += [
            pl.BlockSpec((d_in, H), lambda: (0, 0)),
            pl.BlockSpec((H, H), lambda: (0, 0)),
            pl.BlockSpec((1, H), lambda: (0, 0)),
        ]
    flat_inputs += [params["fc_w_t"], params["fc_b"]]
    in_specs += [
        pl.BlockSpec((H, O), lambda: (0, 0)),
        pl.BlockSpec((1, O), lambda: (0, 0)),
    ]

    kernel = make_fused_rnn_kernel(L, S, B, D, H, O)
    return pl.pallas_call(
        kernel,
        out_shape=jax.ShapeDtypeStruct((B, O), jnp.float32),
        in_specs=in_specs,
        out_specs=pl.BlockSpec((B, O), lambda: (0, 0)),
        scratch_shapes=[pltpu.VMEM((S * B, H), jnp.float32)],
        compiler_params=pltpu.CompilerParams(
            vmem_limit_bytes=32 * 1024 * 1024,  # tiny footprint; safe on v7x too
        ),
    )(*flat_inputs)


def rnn_model_reference(x, params, h0):
    """Pure-JAX reference for validation."""
    x_tm = jnp.transpose(x, (1, 0, 2)).astype(jnp.float32)
    layer_in = x_tm
    for l, (wih_t, whh_t, b) in enumerate(params["rnn"]):
        h = h0[l]
        outs = []
        for t in range(layer_in.shape[0]):
            h = jnp.maximum(layer_in[t] @ wih_t + h @ whh_t + b, 0.0)
            outs.append(h)
        layer_in = jnp.stack(outs, axis=0)
    return layer_in[-1] @ params["fc_w_t"] + params["fc_b"]


def init_params(key, input_dim, hidden_dim, layer_dim, output_dim):
    """Deterministic init mimicking PyTorch defaults: U(-1/sqrt(H), 1/sqrt(H))."""
    bound = 1.0 / np.sqrt(hidden_dim)
    rnn_params = []
    for l in range(layer_dim):
        d_in = input_dim if l == 0 else hidden_dim
        key, k1, k2, k3, k4 = jax.random.split(key, 5)
        w_ih = jax.random.uniform(k1, (hidden_dim, d_in), jnp.float32, -bound, bound)
        w_hh = jax.random.uniform(k2, (hidden_dim, hidden_dim), jnp.float32, -bound, bound)
        b_ih = jax.random.uniform(k3, (hidden_dim,), jnp.float32, -bound, bound)
        b_hh = jax.random.uniform(k4, (hidden_dim,), jnp.float32, -bound, bound)
        # Pre-transpose weights (row-major matmul form) and fold the two biases.
        rnn_params.append((w_ih.T, w_hh.T, (b_ih + b_hh)[None, :]))
    key, k1, k2 = jax.random.split(key, 3)
    fc_w = jax.random.uniform(k1, (output_dim, hidden_dim), jnp.float32, -bound, bound)
    fc_b = jax.random.uniform(k2, (output_dim,), jnp.float32, -bound, bound)
    return {"rnn": rnn_params, "fc_w_t": fc_w.T, "fc_b": fc_b[None, :]}, key


if __name__ == "__main__":
    # Small shapes consistent with the module's forward.
    batch, seq = 2, 8
    input_dim, hidden_dim, layer_dim, output_dim = 16, 32, 2, 4

    root = jax.random.PRNGKey(0)
    k_x, k_h0, k_p = jax.random.split(root, 3)

    x = jax.random.normal(k_x, (batch, seq, input_dim), jnp.float32)
    # init_hidden: torch.rand -> Uniform[0,1)
    h0 = jax.random.uniform(k_h0, (layer_dim, batch, hidden_dim), jnp.float32)

    params, _ = init_params(k_p, input_dim, hidden_dim, layer_dim, output_dim)

    fwd = jax.jit(rnn_model_forward)
    out = fwd(x, params, h0)
    out = jax.block_until_ready(out)

    ref = rnn_model_reference(x, params, h0)
    assert out.shape == (batch, output_dim)
    np.testing.assert_allclose(np.asarray(out), np.asarray(ref), rtol=1e-5, atol=1e-5)

    print("KERNEL_OK")
</pallas_src>

<mosaic_0001>
module attributes {stable_mosaic.version = 11 : i64} {
  func.func @kernel(%arg0: memref<16x16xf32, #tpu.memory_space<vmem>>, %arg1: memref<2x2x32xf32, #tpu.memory_space<vmem>>, %arg2: memref<16x32xf32, #tpu.memory_space<vmem>>, %arg3: memref<32x32xf32, #tpu.memory_space<vmem>>, %arg4: memref<1x32xf32, #tpu.memory_space<vmem>>, %arg5: memref<32x32xf32, #tpu.memory_space<vmem>>, %arg6: memref<32x32xf32, #tpu.memory_space<vmem>>, %arg7: memref<1x32xf32, #tpu.memory_space<vmem>>, %arg8: memref<32x4xf32, #tpu.memory_space<vmem>>, %arg9: memref<1x4xf32, #tpu.memory_space<vmem>>, %arg10: memref<2x4xf32, #tpu.memory_space<vmem>>, %arg11: memref<16x32xf32, #tpu.memory_space<vmem>>) attributes {dimension_semantics = [], scalar_prefetch = 0 : i64, scratch_operands = 1 : i64, tpu.core_type = #tpu.core_type<tc>} {
    %c0 = arith.constant 0 : index
    %c0_0 = arith.constant 0 : index
    %0 = vector.load %arg0[%c0, %c0_0] : memref<16x16xf32, #tpu.memory_space<vmem>>, vector<16x16xf32>
    %c0_1 = arith.constant 0 : index
    %c0_2 = arith.constant 0 : index
    %1 = vector.load %arg2[%c0_1, %c0_2] : memref<16x32xf32, #tpu.memory_space<vmem>>, vector<16x32xf32>
    %cst = arith.constant dense<0.000000e+00> : vector<16x32xf32>
    %2 = tpu.matmul %0, %1, %cst {dimension_numbers = #tpu.dot_dimension_numbers<[1], [0], [0], [1], [0, 0, 1, 1], [], []>} : vector<16x16xf32>, vector<16x32xf32>, vector<16x32xf32> -> vector<16x32xf32>
    %c0_3 = arith.constant 0 : index
    %c0_4 = arith.constant 0 : index
    %3 = vector.load %arg4[%c0_3, %c0_4] : memref<1x32xf32, #tpu.memory_space<vmem>>, vector<1x32xf32>
    %4 = vector.broadcast %3 : vector<1x32xf32> to vector<16x32xf32>
    %5 = arith.addf %2, %4 : vector<16x32xf32>
    %c0_5 = arith.constant 0 : index
    %c0_6 = arith.constant 0 : index
    %6 = vector.load %arg3[%c0_5, %c0_6] : memref<32x32xf32, #tpu.memory_space<vmem>>, vector<32x32xf32>
    %c0_7 = arith.constant 0 : index
    %c0_8 = arith.constant 0 : index
    %c0_9 = arith.constant 0 : index
    %7 = vector.load %arg1[%c0_7, %c0_8, %c0_9] : memref<2x2x32xf32, #tpu.memory_space<vmem>>, vector<1x2x32xf32>
    %8 = vector.shape_cast %7 : vector<1x2x32xf32> to vector<2x32xf32>
    %9 = vector.extract_strided_slice %5 {offsets = [0, 0], sizes = [2, 32], strides = [1, 1]} : vector<16x32xf32> to vector<2x32xf32>
    %cst_10 = arith.constant dense<0.000000e+00> : vector<2x32xf32>
    %10 = tpu.matmul %8, %6, %cst_10 {dimension_numbers = #tpu.dot_dimension_numbers<[1], [0], [0], [1], [0, 0, 1, 1], [], []>} : vector<2x32xf32>, vector<32x32xf32>, vector<2x32xf32> -> vector<2x32xf32>
    %11 = arith.addf %9, %10 : vector<2x32xf32>
    %cst_11 = arith.constant 0.000000e+00 : f32
    %12 = vector.broadcast %cst_11 : f32 to vector<2x32xf32>
    %13 = arith.maximumf %11, %12 : vector<2x32xf32>
    %c0_12 = arith.constant 0 : index
    %c0_13 = arith.constant 0 : index
    %14 = vector.load %arg11[%c0_12, %c0_13] : memref<16x32xf32, #tpu.memory_space<vmem>>, vector<2x32xf32>
    tpu.vector_store %arg11[%c0_12, %c0_13], %13 {strides = array<i32>} : memref<16x32xf32, #tpu.memory_space<vmem>>, vector<2x32xf32>,
    %15 = vector.extract_strided_slice %5 {offsets = [2, 0], sizes = [2, 32], strides = [1, 1]} : vector<16x32xf32> to vector<2x32xf32>
    %cst_14 = arith.constant dense<0.000000e+00> : vector<2x32xf32>
    %16 = tpu.matmul %13, %6, %cst_14 {dimension_numbers = #tpu.dot_dimension_numbers<[1], [0], [0], [1], [0, 0, 1, 1], [], []>} : vector<2x32xf32>, vector<32x32xf32>, vector<2x32xf32> -> vector<2x32xf32>
    %17 = arith.addf %15, %16 : vector<2x32xf32>
    %cst_15 = arith.constant 0.000000e+00 : f32
    %18 = vector.broadcast %cst_15 : f32 to vector<2x32xf32>
    %19 = arith.maximumf %17, %18 : vector<2x32xf32>
    %c2 = arith.constant 2 : index
    %c0_16 = arith.constant 0 : index
    %20 = vector.load %arg11[%c2, %c0_16] : memref<16x32xf32, #tpu.memory_space<vmem>>, vector<2x32xf32>
    tpu.vector_store %arg11[%c2, %c0_16], %19 {strides = array<i32>} : memref<16x32xf32, #tpu.memory_space<vmem>>, vector<2x32xf32>,
    %21 = vector.extract_strided_slice %5 {offsets = [4, 0], sizes = [2, 32], strides = [1, 1]} : vector<16x32xf32> to vector<2x32xf32>
    %cst_17 = arith.constant dense<0.000000e+00> : vector<2x32xf32>
    %22 = tpu.matmul %19, %6, %cst_17 {dimension_numbers = #tpu.dot_dimension_numbers<[1], [0], [0], [1], [0, 0, 1, 1], [], []>} : vector<2x32xf32>, vector<32x32xf32>, vector<2x32xf32> -> vector<2x32xf32>
    %23 = arith.addf %21, %22 : vector<2x32xf32>
    %cst_18 = arith.constant 0.000000e+00 : f32
    %24 = vector.broadcast %cst_18 : f32 to vector<2x32xf32>
    %25 = arith.maximumf %23, %24 : vector<2x32xf32>
    %c4 = arith.constant 4 : index
    %c0_19 = arith.constant 0 : index
    %26 = vector.load %arg11[%c4, %c0_19] : memref<16x32xf32, #tpu.memory_space<vmem>>, vector<2x32xf32>
    tpu.vector_store %arg11[%c4, %c0_19], %25 {strides = array<i32>} : memref<16x32xf32, #tpu.memory_space<vmem>>, vector<2x32xf32>,
    %27 = vector.extract_strided_slice %5 {offsets = [6, 0], sizes = [2, 32], strides = [1, 1]} : vector<16x32xf32> to vector<2x32xf32>
    %cst_20 = arith.constant dense<0.000000e+00> : vector<2x32xf32>
    %28 = tpu.matmul %25, %6, %cst_20 {dimension_numbers = #tpu.dot_dimension_numbers<[1], [0], [0], [1], [0, 0, 1, 1], [], []>} : vector<2x32xf32>, vector<32x32xf32>, vector<2x32xf32> -> vector<2x32xf32>
    %29 = arith.addf %27, %28 : vector<2x32xf32>
    %cst_21 = arith.constant 0.000000e+00 : f32
    %30 = vector.broadcast %cst_21 : f32 to vector<2x32xf32>
    %31 = arith.maximumf %29, %30 : vector<2x32xf32>
    %c6 = arith.constant 6 : index
    %c0_22 = arith.constant 0 : index
    %32 = vector.load %arg11[%c6, %c0_22] : memref<16x32xf32, #tpu.memory_space<vmem>>, vector<2x32xf32>
    tpu.vector_store %arg11[%c6, %c0_22], %31 {strides = array<i32>} : memref<16x32xf32, #tpu.memory_space<vmem>>, vector<2x32xf32>,
    %33 = vector.extract_strided_slice %5 {offsets = [8, 0], sizes = [2, 32], strides = [1, 1]} : vector<16x32xf32> to vector<2x32xf32>
    %cst_23 = arith.constant dense<0.000000e+00> : vector<2x32xf32>
    %34 = tpu.matmul %31, %6, %cst_23 {dimension_numbers = #tpu.dot_dimension_numbers<[1], [0], [0], [1], [0, 0, 1, 1], [], []>} : vector<2x32xf32>, vector<32x32xf32>, vector<2x32xf32> -> vector<2x32xf32>
    %35 = arith.addf %33, %34 : vector<2x32xf32>
    %cst_24 = arith.constant 0.000000e+00 : f32
    %36 = vector.broadcast %cst_24 : f32 to vector<2x32xf32>
    %37 = arith.maximumf %35, %36 : vector<2x32xf32>
    %c8 = arith.constant 8 : index
    %c0_25 = arith.constant 0 : index
    %38 = vector.load %arg11[%c8, %c0_25] : memref<16x32xf32, #tpu.memory_space<vmem>>, vector<2x32xf32>
    tpu.vector_store %arg11[%c8, %c0_25], %37 {strides = array<i32>} : memref<16x32xf32, #tpu.memory_space<vmem>>, vector<2x32xf32>,
    %39 = vector.extract_strided_slice %5 {offsets = [10, 0], sizes = [2, 32], strides = [1, 1]} : vector<16x32xf32> to vector<2x32xf32>
    %cst_26 = arith.constant dense<0.000000e+00> : vector<2x32xf32>
    %40 = tpu.matmul %37, %6, %cst_26 {dimension_numbers = #tpu.dot_dimension_numbers<[1], [0], [0], [1], [0, 0, 1, 1], [], []>} : vector<2x32xf32>, vector<32x32xf32>, vector<2x32xf32> -> vector<2x32xf32>
    %41 = arith.addf %39, %40 : vector<2x32xf32>
    %cst_27 = arith.constant 0.000000e+00 : f32
    %42 = vector.broadcast %cst_27 : f32 to vector<2x32xf32>
    %43 = arith.maximumf %41, %42 : vector<2x32xf32>
    %c10 = arith.constant 10 : index
    %c0_28 = arith.constant 0 : index
    %44 = vector.load %arg11[%c10, %c0_28] : memref<16x32xf32, #tpu.memory_space<vmem>>, vector<2x32xf32>
    tpu.vector_store %arg11[%c10, %c0_28], %43 {strides = array<i32>} : memref<16x32xf32, #tpu.memory_space<vmem>>, vector<2x32xf32>,
    %45 = vector.extract_strided_slice %5 {offsets = [12, 0], sizes = [2, 32], strides = [1, 1]} : vector<16x32xf32> to vector<2x32xf32>
    %cst_29 = arith.constant dense<0.000000e+00> : vector<2x32xf32>
    %46 = tpu.matmul %43, %6, %cst_29 {dimension_numbers = #tpu.dot_dimension_numbers<[1], [0], [0], [1], [0, 0, 1, 1], [], []>} : vector<2x32xf32>, vector<32x32xf32>, vector<2x32xf32> -> vector<2x32xf32>
    %47 = arith.addf %45, %46 : vector<2x32xf32>
    %cst_30 = arith.constant 0.000000e+00 : f32
    %48 = vector.broadcast %cst_30 : f32 to vector<2x32xf32>
    %49 = arith.maximumf %47, %48 : vector<2x32xf32>
    %c12 = arith.constant 12 : index
    %c0_31 = arith.constant 0 : index
    %50 = vector.load %arg11[%c12, %c0_31] : memref<16x32xf32, #tpu.memory_space<vmem>>, vector<2x32xf32>
    tpu.vector_store %arg11[%c12, %c0_31], %49 {strides = array<i32>} : memref<16x32xf32, #tpu.memory_space<vmem>>, vector<2x32xf32>,
    %51 = vector.extract_strided_slice %5 {offsets = [14, 0], sizes = [2, 32], strides = [1, 1]} : vector<16x32xf32> to vector<2x32xf32>
    %cst_32 = arith.constant dense<0.000000e+00> : vector<2x32xf32>
    %52 = tpu.matmul %49, %6, %cst_32 {dimension_numbers = #tpu.dot_dimension_numbers<[1], [0], [0], [1], [0, 0, 1, 1], [], []>} : vector<2x32xf32>, vector<32x32xf32>, vector<2x32xf32> -> vector<2x32xf32>
    %53 = arith.addf %51, %52 : vector<2x32xf32>
    %cst_33 = arith.constant 0.000000e+00 : f32
    %54 = vector.broadcast %cst_33 : f32 to vector<2x32xf32>
    %55 = arith.maximumf %53, %54 : vector<2x32xf32>
    %c14 = arith.constant 14 : index
    %c0_34 = arith.constant 0 : index
    %56 = vector.load %arg11[%c14, %c0_34] : memref<16x32xf32, #tpu.memory_space<vmem>>, vector<2x32xf32>
    tpu.vector_store %arg11[%c14, %c0_34], %55 {strides = array<i32>} : memref<16x32xf32, #tpu.memory_space<vmem>>, vector<2x32xf32>,
    %c0_35 = arith.constant 0 : index
    %c0_36 = arith.constant 0 : index
    %57 = vector.load %arg11[%c0_35, %c0_36] : memref<16x32xf32, #tpu.memory_space<vmem>>, vector<16x32xf32>
    %c0_37 = arith.constant 0 : index
    %c0_38 = arith.constant 0 : index
    %58 = vector.load %arg5[%c0_37, %c0_38] : memref<32x32xf32, #tpu.memory_space<vmem>>, vector<32x32xf32>
    %cst_39 = arith.constant dense<0.000000e+00> : vector<16x32xf32>
    %59 = tpu.matmul %57, %58, %cst_39 {dimension_numbers = #tpu.dot_dimension_numbers<[1], [0], [0], [1], [0, 0, 1, 1], [], []>} : vector<16x32xf32>, vector<32x32xf32>, vector<16x32xf32> -> vector<16x32xf32>
    %c0_40 = arith.constant 0 : index
    %c0_41 = arith.constant 0 : index
    %60 = vector.load %arg7[%c0_40, %c0_41] : memref<1x32xf32, #tpu.memory_space<vmem>>, vector<1x32xf32>
    %61 = vector.broadcast %60 : vector<1x32xf32> to vector<16x32xf32>
    %62 = arith.addf %59, %61 : vector<16x32xf32>
    %c0_42 = arith.constant 0 : index
    %c0_43 = arith.constant 0 : index
    %63 = vector.load %arg6[%c0_42, %c0_43] : memref<32x32xf32, #tpu.memory_space<vmem>>, vector<32x32xf32>
    %c1 = arith.constant 1 : index
    %c0_44 = arith.constant 0 : index
    %c0_45 = arith.constant 0 : index
    %64 = vector.load %arg1[%c1, %c0_44, %c0_45] : memref<2x2x32xf32, #tpu.memory_space<vmem>>, vector<1x2x32xf32>
    %65 = vector.shape_cast %64 : vector<1x2x32xf32> to vector<2x32xf32>
    %66 = vector.extract_strided_slice %62 {offsets = [0, 0], sizes = [2, 32], strides = [1, 1]} : vector<16x32xf32> to vector<2x32xf32>
    %cst_46 = arith.constant dense<0.000000e+00> : vector<2x32xf32>
    %67 = tpu.matmul %65, %63, %cst_46 {dimension_numbers = #tpu.dot_dimension_numbers<[1], [0], [0], [1], [0, 0, 1, 1], [], []>} : vector<2x32xf32>, vector<32x32xf32>, vector<2x32xf32> -> vector<2x32xf32>
    %68 = arith.addf %66, %67 : vector<2x32xf32>
    %cst_47 = arith.constant 0.000000e+00 : f32
    %69 = vector.broadcast %cst_47 : f32 to vector<2x32xf32>
    %70 = arith.maximumf %68, %69 : vector<2x32xf32>
    %71 = vector.extract_strided_slice %62 {offsets = [2, 0], sizes = [2, 32], strides = [1, 1]} : vector<16x32xf32> to vector<2x32xf32>
    %cst_48 = arith.constant dense<0.000000e+00> : vector<2x32xf32>
    %72 = tpu.matmul %70, %63, %cst_48 {dimension_numbers = #tpu.dot_dimension_numbers<[1], [0], [0], [1], [0, 0, 1, 1], [], []>} : vector<2x32xf32>, vector<32x32xf32>, vector<2x32xf32> -> vector<2x32xf32>
    %73 = arith.addf %71, %72 : vector<2x32xf32>
    %cst_49 = arith.constant 0.000000e+00 : f32
    %74 = vector.broadcast %cst_49 : f32 to vector<2x32xf32>
    %75 = arith.maximumf %73, %74 : vector<2x32xf32>
    %76 = vector.extract_strided_slice %62 {offsets = [4, 0], sizes = [2, 32], strides = [1, 1]} : vector<16x32xf32> to vector<2x32xf32>
    %cst_50 = arith.constant dense<0.000000e+00> : vector<2x32xf32>
    %77 = tpu.matmul %75, %63, %cst_50 {dimension_numbers = #tpu.dot_dimension_numbers<[1], [0], [0], [1], [0, 0, 1, 1], [], []>} : vector<2x32xf32>, vector<32x32xf32>, vector<2x32xf32> -> vector<2x32xf32>
    %78 = arith.addf %76, %77 : vector<2x32xf32>
    %cst_51 = arith.constant 0.000000e+00 : f32
    %79 = vector.broadcast %cst_51 : f32 to vector<2x32xf32>
    %80 = arith.maximumf %78, %79 : vector<2x32xf32>
    %81 = vector.extract_strided_slice %62 {offsets = [6, 0], sizes = [2, 32], strides = [1, 1]} : vector<16x32xf32> to vector<2x32xf32>
    %cst_52 = arith.constant dense<0.000000e+00> : vector<2x32xf32>
    %82 = tpu.matmul %80, %63, %cst_52 {dimension_numbers = #tpu.dot_dimension_numbers<[1], [0], [0], [1], [0, 0, 1, 1], [], []>} : vector<2x32xf32>, vector<32x32xf32>, vector<2x32xf32> -> vector<2x32xf32>
    %83 = arith.addf %81, %82 : vector<2x32xf32>
    %cst_53 = arith.constant 0.000000e+00 : f32
    %84 = vector.broadcast %cst_53 : f32 to vector<2x32xf32>
    %85 = arith.maximumf %83, %84 : vector<2x32xf32>
    %86 = vector.extract_strided_slice %62 {offsets = [8, 0], sizes = [2, 32], strides = [1, 1]} : vector<16x32xf32> to vector<2x32xf32>
    %cst_54 = arith.constant dense<0.000000e+00> : vector<2x32xf32>
    %87 = tpu.matmul %85, %63, %cst_54 {dimension_numbers = #tpu.dot_dimension_numbers<[1], [0], [0], [1], [0, 0, 1, 1], [], []>} : vector<2x32xf32>, vector<32x32xf32>, vector<2x32xf32> -> vector<2x32xf32>
    %88 = arith.addf %86, %87 : vector<2x32xf32>
    %cst_55 = arith.constant 0.000000e+00 : f32
    %89 = vector.broadcast %cst_55 : f32 to vector<2x32xf32>
    %90 = arith.maximumf %88, %89 : vector<2x32xf32>
    %91 = vector.extract_strided_slice %62 {offsets = [10, 0], sizes = [2, 32], strides = [1, 1]} : vector<16x32xf32> to vector<2x32xf32>
    %cst_56 = arith.constant dense<0.000000e+00> : vector<2x32xf32>
    %92 = tpu.matmul %90, %63, %cst_56 {dimension_numbers = #tpu.dot_dimension_numbers<[1], [0], [0], [1], [0, 0, 1, 1], [], []>} : vector<2x32xf32>, vector<32x32xf32>, vector<2x32xf32> -> vector<2x32xf32>
    %93 = arith.addf %91, %92 : vector<2x32xf32>
    %cst_57 = arith.constant 0.000000e+00 : f32
    %94 = vector.broadcast %cst_57 : f32 to vector<2x32xf32>
    %95 = arith.maximumf %93, %94 : vector<2x32xf32>
    %96 = vector.extract_strided_slice %62 {offsets = [12, 0], sizes = [2, 32], strides = [1, 1]} : vector<16x32xf32> to vector<2x32xf32>
    %cst_58 = arith.constant dense<0.000000e+00> : vector<2x32xf32>
    %97 = tpu.matmul %95, %63, %cst_58 {dimension_numbers = #tpu.dot_dimension_numbers<[1], [0], [0], [1], [0, 0, 1, 1], [], []>} : vector<2x32xf32>, vector<32x32xf32>, vector<2x32xf32> -> vector<2x32xf32>
    %98 = arith.addf %96, %97 : vector<2x32xf32>
    %cst_59 = arith.constant 0.000000e+00 : f32
    %99 = vector.broadcast %cst_59 : f32 to vector<2x32xf32>
    %100 = arith.maximumf %98, %99 : vector<2x32xf32>
    %101 = vector.extract_strided_slice %62 {offsets = [14, 0], sizes = [2, 32], strides = [1, 1]} : vector<16x32xf32> to vector<2x32xf32>
    %cst_60 = arith.constant dense<0.000000e+00> : vector<2x32xf32>
    %102 = tpu.matmul %100, %63, %cst_60 {dimension_numbers = #tpu.dot_dimension_numbers<[1], [0], [0], [1], [0, 0, 1, 1], [], []>} : vector<2x32xf32>, vector<32x32xf32>, vector<2x32xf32> -> vector<2x32xf32>
    %103 = arith.addf %101, %102 : vector<2x32xf32>
    %cst_61 = arith.constant 0.000000e+00 : f32
    %104 = vector.broadcast %cst_61 : f32 to vector<2x32xf32>
    %105 = arith.maximumf %103, %104 : vector<2x32xf32>
    %c0_62 = arith.constant 0 : index
    %c0_63 = arith.constant 0 : index
    %106 = vector.load %arg8[%c0_62, %c0_63] : memref<32x4xf32, #tpu.memory_space<vmem>>, vector<32x4xf32>
    %cst_64 = arith.constant dense<0.000000e+00> : vector<2x4xf32>
    %107 = tpu.matmul %105, %106, %cst_64 {dimension_numbers = #tpu.dot_dimension_numbers<[1], [0], [0], [1], [0, 0, 1, 1], [], []>} : vector<2x32xf32>, vector<32x4xf32>, vector<2x4xf32> -> vector<2x4xf32>
    %c0_65 = arith.constant 0 : index
    %c0_66 = arith.constant 0 : index
    %108 = vector.load %arg9[%c0_65, %c0_66] : memref<1x4xf32, #tpu.memory_space<vmem>>, vector<1x4xf32>
    %109 = vector.broadcast %108 : vector<1x4xf32> to vector<2x4xf32>
    %110 = arith.addf %107, %109 : vector<2x4xf32>
    %c0_67 = arith.constant 0 : index
    %c0_68 = arith.constant 0 : index
    %111 = vector.load %arg10[%c0_67, %c0_68] : memref<2x4xf32, #tpu.memory_space<vmem>>, vector<2x4xf32>
    tpu.vector_store %arg10[%c0_67, %c0_68], %110 {strides = array<i32>} : memref<2x4xf32, #tpu.memory_space<vmem>>, vector<2x4xf32>,
    return
  }
}

</mosaic_0001>

<llo_original>
// kernel: rnn_model_forward.1
$region0: #{rnn_model_forward.1}
  #allocation0 [shape = 'u32[]', space=smem, size = 0x4, offset = 0x4, fixed_abs, tag = 'smem constant byte address 0x4 - core index']
  #allocation1 [shape = 'u32[144,128]{1,0:T(1,128)}', space=vmem, size = 0x12000, scoped, tag = 'internal scratch']
  #allocation2 [shape = 'f32[16,32]{1,0:T(8,128)}', space=vmem, size = 0x2000, scoped, tag = 'scratch operand']
  %s0 = inlined_call_operand.vmem [shape: f32[16,16], index: 0, kind: input, shape index: {}]
  %s1 = inlined_call_operand.vmem [shape: f32[2,2,32], index: 1, kind: input, shape index: {}]
  %s2 = inlined_call_operand.hbm [shape: f32[16,32], index: 2, kind: input, shape index: {}]
  %s3 = inlined_call_operand.vmem [shape: f32[32,32], index: 3, kind: input, shape index: {}]
  %s4 = inlined_call_operand.vmem [shape: f32[1,32], index: 4, kind: input, shape index: {}]
  %s5 = inlined_call_operand.vmem [shape: f32[32,32], index: 5, kind: input, shape index: {}]
  %s6 = inlined_call_operand.vmem [shape: f32[32,32], index: 6, kind: input, shape index: {}]
  %s7 = inlined_call_operand.vmem [shape: f32[1,32], index: 7, kind: input, shape index: {}]
  %s8 = inlined_call_operand.vmem [shape: f32[32,4], index: 8, kind: input, shape index: {}]
  %s9 = inlined_call_operand.hbm [shape: f32[1,4], index: 9, kind: input, shape index: {}]
  %s10 = inlined_call_operand.hbm [shape: f32[2,4], index: 10, kind: output, shape index: {}]
  %s11 = sld [smem:[#allocation0]]
  $region58: #{rnn_model_forward.1} parent=0
    _
  %s13 = ssub.s32 1, %s11
  %s14 = scalar_select 0, %s13, %s11
  $region1: #{rnn_model_forward.1} parent=0
    #allocation3 [shape = 'u8[8192]{0}', space=vmem, size = 0x2000, scoped, tag = 'input window, operand 2, single buffered']
    #allocation4 [shape = 's32[1]{0}', space=sflag, size = 0x4, scoped, tag = 'scoped memory for rnn_model_forward.1']
    #allocation5 [shape = 's32[1]{0}', space=sflag, size = 0x4, scoped, tag = 'scoped memory for rnn_model_forward.1']
    #allocation6 [shape = 'u8[512]{0}', space=vmem, size = 0x400, scoped, tag = 'input window, operand 9, single buffered']
    #allocation7 [shape = 's32[1]{0}', space=sflag, size = 0x4, scoped, tag = 'scoped memory for rnn_model_forward.1']
    #allocation8 [shape = 'u8[1024]{0}', space=vmem, size = 0x400, scoped, tag = 'output window, operand 0, single buffered']
    %15 = vsyncpa [#allocation4], 0
    %16 = vsyncpa [#allocation7], 0
    %17 = vsyncpa [#allocation5], 0
    // Predicated region
    $region2: #{rnn_model_forward.1} parent=1 // pred_check
      _
    $region3: #{rnn_model_forward.1} parent=1 // pred_check_branch
      %19 = sbr.rel (0) target = $region5
    $region4: #{rnn_model_forward.1} parent=1 // pred_region
      _
    $region5: #{rnn_model_forward.1} parent=1 // pred_fallthru
      _
    // Predicated region
    $region6: #{rnn_model_forward.1} parent=1 // pred_check
      _
    $region7: #{rnn_model_forward.1} parent=1 // pred_check_branch
      %21 = sbr.rel (0) target = $region9
    $region8: #{rnn_model_forward.1} parent=1 // pred_region
      _
    $region9: #{rnn_model_forward.1} parent=1 // pred_fallthru
      _
    // Predicated region
    $region10: #{rnn_model_forward.1} parent=1 // pred_check
      _
    $region11: #{rnn_model_forward.1} parent=1 // pred_check_branch
      %23 = sbr.rel (0) target = $region13
    $region12: #{rnn_model_forward.1} parent=1 // pred_region
      %s25 = ssub.s32 256, 256
      %26 = vsyncadd [#allocation4], %s25
      %s27 = sshll.u32 [#allocation3], 4
      %s28 = int_to_ptr.vmem [resolvable:$true] %s27
      %33 = dma.hbm_to_vmem [thread:$0]  %s2, 256, %s28, [#allocation4], 128, 128, 8
    $region13: #{rnn_model_forward.1} parent=1 // pred_fallthru
      _
    // Predicated region
    $region14: #{rnn_model_forward.1} parent=1 // pred_check
      _
    $region15: #{rnn_model_forward.1} parent=1 // pred_check_branch
      %35 = sbr.rel (0) target = $region17
    $region16: #{rnn_model_forward.1} parent=1 // pred_region
      _
    $region17: #{rnn_model_forward.1} parent=1 // pred_fallthru
      _
    // Predicated region
    $region18: #{rnn_model_forward.1} parent=1 // pred_check
      _
    $region19: #{rnn_model_forward.1} parent=1 // pred_check_branch
      %37 = sbr.rel (0) target = $region21
    $region20: #{rnn_model_forward.1} parent=1 // pred_region
      _
    $region21: #{rnn_model_forward.1} parent=1 // pred_fallthru
      _
    // Predicated region
    $region22: #{rnn_model_forward.1} parent=1 // pred_check
      _
    $region23: #{rnn_model_forward.1} parent=1 // pred_check_branch
      %39 = sbr.rel (0) target = $region25
    $region24: #{rnn_model_forward.1} parent=1 // pred_region
      _
    $region25: #{rnn_model_forward.1} parent=1 // pred_fallthru
      _
    // Predicated region
    $region26: #{rnn_model_forward.1} parent=1 // pred_check
      _
    $region27: #{rnn_model_forward.1} parent=1 // pred_check_branch
      %41 = sbr.rel (0) target = $region29
    $region28: #{rnn_model_forward.1} parent=1 // pred_region
      _
    $region29: #{rnn_model_forward.1} parent=1 // pred_fallthru
      _
    // Predicated region
    $region30: #{rnn_model_forward.1} parent=1 // pred_check
      _
    $region31: #{rnn_model_forward.1} parent=1 // pred_check_branch
      %43 = sbr.rel (0) target = $region33
    $region32: #{rnn_model_forward.1} parent=1 // pred_region
      _
    $region33: #{rnn_model_forward.1} parent=1 // pred_fallthru
      _
    // Predicated region
    $region34: #{rnn_model_forward.1} parent=1 // pred_check
      _
    $region35: #{rnn_model_forward.1} parent=1 // pred_check_branch
      %45 = sbr.rel (0) target = $region37
    $region36: #{rnn_model_forward.1} parent=1 // pred_region
      _
    $region37: #{rnn_model_forward.1} parent=1 // pred_fallthru
      _
    // Predicated region
    $region38: #{rnn_model_forward.1} parent=1 // pred_check
      _
    $region39: #{rnn_model_forward.1} parent=1 // pred_check_branch
      %47 = sbr.rel (0) target = $region41
    $region40: #{rnn_model_forward.1} parent=1 // pred_region
      %s49 = ssub.s32 16, 16
      %50 = vsyncadd [#allocation7], %s49
      %s52 = sshll.u32 [#allocation6], 4
      %s53 = int_to_ptr.vmem [resolvable:$true] %s52
      %55 = dma.hbm_to_vmem [thread:$0]  %s9, 16, %s53, [#allocation7]
    $region41: #{rnn_model_forward.1} parent=1 // pred_fallthru
      _
    // Predicated region
    $region42: #{rnn_model_forward.1} parent=1 // pred_check
      _
    $region43: #{rnn_model_forward.1} parent=1 // pred_check_branch
      %57 = sbr.rel (0) target = $region45
    $region44: #{rnn_model_forward.1} parent=1 // pred_region
      %58 = dma.done [#allocation4], 256
    $region45: #{rnn_model_forward.1} parent=1 // pred_fallthru
      _
    // Predicated region
    $region46: #{rnn_model_forward.1} parent=1 // pred_check
      _
    $region47: #{rnn_model_forward.1} parent=1 // pred_check_branch
      %60 = sbr.rel (0) target = $region49
    $region48: #{rnn_model_forward.1} parent=1 // pred_region
      %61 = dma.done [#allocation7], 16
    $region49: #{rnn_model_forward.1} parent=1 // pred_fallthru
      _
    %v62 = vld [vmem:[%s0] sm:$0xff]
    %v63 = vld [vmem:[%s0 + $0x8] sm:$0xff]
    %v64 = vld [vmem:[#allocation3] sm:$0xff]
    %v65 = vld [vmem:[#allocation3 + $0x8] sm:$0xff]
    %v66 = vld [vmem:[%s4] sm:$0x1]
    %v68 = vlaneseq
    %v69 = vshrl.u32 %v68, 7
    %v70 = vsub.s32 0, %v69
    %v71 = vrot.slane %v66, %v70
    %vm73 = vcmask 130048
    %v75 = vsel %vm73, %v62, 0
    %v78 = vsel %vm73, %v63, 0
    %80 = vmatprep.subr.mxu0 0.0
    %81 = vmatpush1.msra.mxu0 %v64
    %82 = vmatprep.subr.mxu0 0.0
    %83 = vmatpush1.msra.mxu0 %v65
    %84 = vmatprep.subr.mxu0 0.0
    %85 = vmatpush1.msra.mxu0 0.0
    %86 = vmatprep.subr.mxu0 0.0
    %87 = vmatpush1.msra.mxu0 0.0
    %88 = vmatprep.subr.mxu0 0.0
    %89 = vmatpush1.msra.mxu0 0.0
    %90 = vmatprep.subr.mxu0 0.0
    %91 = vmatpush1.msra.mxu0 0.0
    %92 = vmatprep.subr.mxu0 0.0
    %93 = vmatpush1.msra.mxu0 0.0
    %94 = vmatprep.subr.mxu0 0.0
    %95 = vmatpush1.msra.mxu0 0.0
    %96 = vmatprep.subr.mxu0 0.0
    %97 = vmatpush1.msra.mxu0 0.0
    %98 = vmatprep.subr.mxu0 0.0
    %99 = vmatpush1.msra.mxu0 0.0
    %100 = vmatprep.subr.mxu0 0.0
    %101 = vmatpush1.msra.mxu0 0.0
    %102 = vmatprep.subr.mxu0 0.0
    %103 = vmatpush1.msra.mxu0 0.0
    %104 = vmatprep.subr.mxu0 0.0
    %105 = vmatpush1.msra.mxu0 0.0
    %106 = vmatprep.subr.mxu0 0.0
    %107 = vmatpush1.msra.mxu0 0.0
    %108 = vmatprep.subr.mxu0 0.0
    %109 = vmatpush1.msra.mxu0 0.0
    %110 = vmatprep.subr.mxu0 0.0
    %111 = vmatpush1.msra.mxu0 0.0
    %112 = vmatprep.subr.mxu0 0.0
    %113 = vmatpush1.msra.mxu0 0.0
    %114 = vmatprep.subr.mxu0 0.0
    %115 = vmatpush1.msra.mxu0 0.0
    %116 = vmatprep.subr.mxu0 0.0
    %117 = vmatpush1.msra.mxu0 0.0
    %118 = vmatprep.subr.mxu0 0.0
    %119 = vmatpush1.msra.mxu0 0.0
    %120 = vmatprep.subr.mxu0 0.0
    %121 = vmatpush1.msra.mxu0 0.0
    %122 = vmatprep.subr.mxu0 0.0
    %123 = vmatpush1.msra.mxu0 0.0
    %124 = vmatprep.subr.mxu0 0.0
    %125 = vmatpush1.msra.mxu0 0.0
    %126 = vmatprep.subr.mxu0 0.0
    %127 = vmatpush1.msra.mxu0 0.0
    %128 = vmatprep.subr.mxu0 0.0
    %129 = vmatpush1.msra.mxu0 0.0
    %130 = vmatprep.subr.mxu0 0.0
    %131 = vmatpush1.msra.mxu0 0.0
    %132 = vmatprep.subr.mxu0 0.0
    %133 = vmatpush1.msra.mxu0 0.0
    %134 = vmatprep.subr.mxu0 0.0
    %135 = vmatpush1.msra.mxu0 0.0
    %136 = vmatprep.subr.mxu0 0.0
    %137 = vmatpush1.msra.mxu0 0.0
    %138 = vmatprep.subr.mxu0 0.0
    %139 = vmatpush1.msra.mxu0 0.0
    %140 = vmatprep.subr.mxu0 0.0
    %141 = vmatpush1.msra.mxu0 0.0
    %142 = vmatprep.subr.mxu0 0.0
    %143 = vmatpush1.msra.mxu0 0.0
    %144 = vmatprep.mubr.f32.mxu0 0.0
    %145 = vmatmul.mubr.f32.gmra.mrb[0].mxu0 %v75
    %v146 = vpop.f32.mrb[0].mxu0
    %v147 = vadd.f32 %v71, %v146
    %v148 = vpop.f32.mrb[0].mxu0
    %149 = vmatprep.mubr.f32.mxu0 0.0
    %150 = vmatmul.mubr.f32.gmra.mrb[0].mxu0 %v78
    %v151 = vpop.f32.mrb[0].mxu0
    %v152 = vadd.f32 %v71, %v151
    %v153 = vpop.f32.mrb[0].mxu0
    %154 = vdwg.mxu0
    %v155 = vld [vmem:[%s3] sm:$0xff]
    %v156 = vld [vmem:[%s3 + $0x8] sm:$0xff]
    %v157 = vld [vmem:[%s3 + $0x10] sm:$0xff]
    %v158 = vld [vmem:[%s3 + $0x18] sm:$0xff]
    %v159 = vld [vmem:[%s1] sm:$0x3]
    %vm160 = vcmask 261120
    %v162 = vsel %vm160, %v159, 0
    %164 = vmatprep.subr.mxu0 0.0
    %165 = vmatpush1.msra.mxu0 %v155
    %166 = vmatprep.subr.mxu0 0.0
    %167 = vmatpush1.msra.mxu0 %v156
    %168 = vmatprep.subr.mxu0 0.0
    %169 = vmatpush1.msra.mxu0 %v157
    %170 = vmatprep.subr.mxu0 0.0
    %171 = vmatpush1.msra.mxu0 %v158
    %172 = vmatprep.subr.mxu0 0.0
    %173 = vmatpush1.msra.mxu0 0.0
    %174 = vmatprep.subr.mxu0 0.0
    %175 = vmatpush1.msra.mxu0 0.0
    %176 = vmatprep.subr.mxu0 0.0
    %177 = vmatpush1.msra.mxu0 0.0
    %178 = vmatprep.subr.mxu0 0.0
    %179 = vmatpush1.msra.mxu0 0.0
    %180 = vmatprep.subr.mxu0 0.0
    %181 = vmatpush1.msra.mxu0 0.0
    %182 = vmatprep.subr.mxu0 0.0
    %183 = vmatpush1.msra.mxu0 0.0
    %184 = vmatprep.subr.mxu0 0.0
    %185 = vmatpush1.msra.mxu0 0.0
    %186 = vmatprep.subr.mxu0 0.0
    %187 = vmatpush1.msra.mxu0 0.0
    %188 = vmatprep.subr.mxu0 0.0
    %189 = vmatpush1.msra.mxu0 0.0
    %190 = vmatprep.subr.mxu0 0.0
    %191 = vmatpush1.msra.mxu0 0.0
    %192 = vmatprep.subr.mxu0 0.0
    %193 = vmatpush1.msra.mxu0 0.0
    %194 = vmatprep.subr.mxu0 0.0
    %195 = vmatpush1.msra.mxu0 0.0
    %196 = vmatprep.subr.mxu0 0.0
    %197 = vmatpush1.msra.mxu0 0.0
    %198 = vmatprep.subr.mxu0 0.0
    %199 = vmatpush1.msra.mxu0 0.0
    %200 = vmatprep.subr.mxu0 0.0
    %201 = vmatpush1.msra.mxu0 0.0
    %202 = vmatprep.subr.mxu0 0.0
    %203 = vmatpush1.msra.mxu0 0.0
    %204 = vmatprep.subr.mxu0 0.0
    %205 = vmatpush1.msra.mxu0 0.0
    %206 = vmatprep.subr.mxu0 0.0
    %207 = vmatpush1.msra.mxu0 0.0
    %208 = vmatprep.subr.mxu0 0.0
    %209 = vmatpush1.msra.mxu0 0.0
    %210 = vmatprep.subr.mxu0 0.0
    %211 = vmatpush1.msra.mxu0 0.0
    %212 = vmatprep.subr.mxu0 0.0
    %213 = vmatpush1.msra.mxu0 0.0
    %214 = vmatprep.subr.mxu0 0.0
    %215 = vmatpush1.msra.mxu0 0.0
    %216 = vmatprep.subr.mxu0 0.0
    %217 = vmatpush1.msra.mxu0 0.0
    %218 = vmatprep.subr.mxu0 0.0
    %219 = vmatpush1.msra.mxu0 0.0
    %220 = vmatprep.subr.mxu0 0.0
    %221 = vmatpush1.msra.mxu0 0.0
    %222 = vmatprep.subr.mxu0 0.0
    %223 = vmatpush1.msra.mxu0 0.0
    %224 = vmatprep.subr.mxu0 0.0
    %225 = vmatpush1.msra.mxu0 0.0
    %226 = vmatprep.subr.mxu0 0.0
    %227 = vmatpush1.msra.mxu0 0.0
    %228 = vmatprep.mubr.f32.mxu0 0.0
    %229 = vmatmul.mubr.f32.gmra.mrb[0].mxu0 %v162
    %v230 = vpop.f32.mrb[0].mxu0
    %v231 = vadd.f32 0.0, %v230
    %v232 = vpop.f32.mrb[0].mxu0
    %233 = vdwg.mxu0
    %v234 = vadd.f32 %v147, %v231
    %v235 = vmax.f32 %v234, 0.0
    %vm236 = vcmask 254976
    %237 = vst.msk [vmem:[#allocation2] sm:$0x3] %vm236, %v235
    %v239 = vsel %vm160, %v235, 0
    %241 = vmatprep.subr.mxu0 0.0
    %242 = vmatpush1.msra.mxu0 %v155
    %243 = vmatprep.subr.mxu0 0.0
    %244 = vmatpush1.msra.mxu0 %v156
    %245 = vmatprep.subr.mxu0 0.0
    %246 = vmatpush1.msra.mxu0 %v157
    %247 = vmatprep.subr.mxu0 0.0
    %248 = vmatpush1.msra.mxu0 %v158
    %249 = vmatprep.subr.mxu0 0.0
    %250 = vmatpush1.msra.mxu0 0.0
    %251 = vmatprep.subr.mxu0 0.0
    %252 = vmatpush1.msra.mxu0 0.0
    %253 = vmatprep.subr.mxu0 0.0
    %254 = vmatpush1.msra.mxu0 0.0
    %255 = vmatprep.subr.mxu0 0.0
    %256 = vmatpush1.msra.mxu0 0.0
    %257 = vmatprep.subr.mxu0 0.0
    %258 = vmatpush1.msra.mxu0 0.0
    %259 = vmatprep.subr.mxu0 0.0
    %260 = vmatpush1.msra.mxu0 0.0
    %261 = vmatprep.subr.mxu0 0.0
    %262 = vmatpush1.msra.mxu0 0.0
    %263 = vmatprep.subr.mxu0 0.0
    %264 = vmatpush1.msra.mxu0 0.0
    %265 = vmatprep.subr.mxu0 0.0
    %266 = vmatpush1.msra.mxu0 0.0
    %267 = vmatprep.subr.mxu0 0.0
    %268 = vmatpush1.msra.mxu0 0.0
    %269 = vmatprep.subr.mxu0 0.0
    %270 = vmatpush1.msra.mxu0 0.0
    %271 = vmatprep.subr.mxu0 0.0
    %272 = vmatpush1.msra.mxu0 0.0
    %273 = vmatprep.subr.mxu0 0.0
    %274 = vmatpush1.msra.mxu0 0.0
    %275 = vmatprep.subr.mxu0 0.0
    %276 = vmatpush1.msra.mxu0 0.0
    %277 = vmatprep.subr.mxu0 0.0
    %278 = vmatpush1.msra.mxu0 0.0
    %279 = vmatprep.subr.mxu0 0.0
    %280 = vmatpush1.msra.mxu0 0.0
    %281 = vmatprep.subr.mxu0 0.0
    %282 = vmatpush1.msra.mxu0 0.0
    %283 = vmatprep.subr.mxu0 0.0
    %284 = vmatpush1.msra.mxu0 0.0
    %285 = vmatprep.subr.mxu0 0.0
    %286 = vmatpush1.msra.mxu0 0.0
    %287 = vmatprep.subr.mxu0 0.0
    %288 = vmatpush1.msra.mxu0 0.0
    %289 = vmatprep.subr.mxu0 0.0
    %290 = vmatpush1.msra.mxu0 0.0
    %291 = vmatprep.subr.mxu0 0.0
    %292 = vmatpush1.msra.mxu0 0.0
    %293 = vmatprep.subr.mxu0 0.0
    %294 = vmatpush1.msra.mxu0 0.0
    %295 = vmatprep.subr.mxu0 0.0
    %296 = vmatpush1.msra.mxu0 0.0
    %297 = vmatprep.subr.mxu0 0.0
    %298 = vmatpush1.msra.mxu0 0.0
    %299 = vmatprep.subr.mxu0 0.0
    %300 = vmatpush1.msra.mxu0 0.0
    %301 = vmatprep.subr.mxu0 0.0
    %302 = vmatpush1.msra.mxu0 0.0
    %303 = vmatprep.subr.mxu0 0.0
    %304 = vmatpush1.msra.mxu0 0.0
    %305 = vmatprep.mubr.f32.mxu0 0.0
    %306 = vmatmul.mubr.f32.gmra.mrb[0].mxu0 %v239
    %v307 = vpop.f32.mrb[0].mxu0
    %v308 = vadd.f32 0.0, %v307
    %v309 = vpop.f32.mrb[0].mxu0
    %310 = vdwg.mxu0
    %v312 = vrot.slane %v308, 6
    %v314 = vadd.f32 %v147, %v312
    %v315 = vmax.f32 %v314, 0.0
    %vm316 = vcmask 257026
    %317 = vst.msk [vmem:[#allocation2] sm:$0xc] %vm316, %v315
    %v319 = vrot.slane %v315, 2
    %v320 = vsel %vm160, %v319, 0
    %322 = vmatprep.subr.mxu0 0.0
    %323 = vmatpush1.msra.mxu0 %v155
    %324 = vmatprep.subr.mxu0 0.0
    %325 = vmatpush1.msra.mxu0 %v156
    %326 = vmatprep.subr.mxu0 0.0
    %327 = vmatpush1.msra.mxu0 %v157
    %328 = vmatprep.subr.mxu0 0.0
    %329 = vmatpush1.msra.mxu0 %v158
    %330 = vmatprep.subr.mxu0 0.0
    %331 = vmatpush1.msra.mxu0 0.0
    %332 = vmatprep.subr.mxu0 0.0
    %333 = vmatpush1.msra.mxu0 0.0
    %334 = vmatprep.subr.mxu0 0.0
    %335 = vmatpush1.msra.mxu0 0.0
    %336 = vmatprep.subr.mxu0 0.0
    %337 = vmatpush1.msra.mxu0 0.0
    %338 = vmatprep.subr.mxu0 0.0
    %339 = vmatpush1.msra.mxu0 0.0
    %340 = vmatprep.subr.mxu0 0.0
    %341 = vmatpush1.msra.mxu0 0.0
    %342 = vmatprep.subr.mxu0 0.0
    %343 = vmatpush1.msra.mxu0 0.0
    %344 = vmatprep.subr.mxu0 0.0
    %345 = vmatpush1.msra.mxu0 0.0
    %346 = vmatprep.subr.mxu0 0.0
    %347 = vmatpush1.msra.mxu0 0.0
    %348 = vmatprep.subr.mxu0 0.0
    %349 = vmatpush1.msra.mxu0 0.0
    %350 = vmatprep.subr.mxu0 0.0
    %351 = vmatpush1.msra.mxu0 0.0
    %352 = vmatprep.subr.mxu0 0.0
    %353 = vmatpush1.msra.mxu0 0.0
    %354 = vmatprep.subr.mxu0 0.0
    %355 = vmatpush1.msra.mxu0 0.0
    %356 = vmatprep.subr.mxu0 0.0
    %357 = vmatpush1.msra.mxu0 0.0
    %358 = vmatprep.subr.mxu0 0.0
    %359 = vmatpush1.msra.mxu0 0.0
    %360 = vmatprep.subr.mxu0 0.0
    %361 = vmatpush1.msra.mxu0 0.0
    %362 = vmatprep.subr.mxu0 0.0
    %363 = vmatpush1.msra.mxu0 0.0
    %364 = vmatprep.subr.mxu0 0.0
    %365 = vmatpush1.msra.mxu0 0.0
    %366 = vmatprep.subr.mxu0 0.0
    %367 = vmatpush1.msra.mxu0 0.0
    %368 = vmatprep.subr.mxu0 0.0
    %369 = vmatpush1.msra.mxu0 0.0
    %370 = vmatprep.subr.mxu0 0.0
    %371 = vmatpush1.msra.mxu0 0.0
    %372 = vmatprep.subr.mxu0 0.0
    %373 = vmatpush1.msra.mxu0 0.0
    %374 = vmatprep.subr.mxu0 0.0
    %375 = vmatpush1.msra.mxu0 0.0
    %376 = vmatprep.subr.mxu0 0.0
    %377 = vmatpush1.msra.mxu0 0.0
    %378 = vmatprep.subr.mxu0 0.0
    %379 = vmatpush1.msra.mxu0 0.0
    %380 = vmatprep.subr.mxu0 0.0
    %381 = vmatpush1.msra.mxu0 0.0
    %382 = vmatprep.subr.mxu0 0.0
    %383 = vmatpush1.msra.mxu0 0.0
    %384 = vmatprep.subr.mxu0 0.0
    %385 = vmatpush1.msra.mxu0 0.0
    %386 = vmatprep.mubr.f32.mxu0 0.0
    %387 = vmatmul.mubr.f32.gmra.mrb[0].mxu0 %v320
    %v388 = vpop.f32.mrb[0].mxu0
    %v389 = vadd.f32 0.0, %v388
    %v390 = vpop.f32.mrb[0].mxu0
    %391 = vdwg.mxu0
    %v393 = vrot.slane %v389, 4
    %v395 = vadd.f32 %v147, %v393
    %v396 = vmax.f32 %v395, 0.0
    %vm397 = vcmask 259076
    %398 = vst.msk [vmem:[#allocation2] sm:$0x30] %vm397, %v396
    %v400 = vrot.slane %v396, 4
    %v401 = vsel %vm160, %v400, 0
    %403 = vmatprep.subr.mxu0 0.0
    %404 = vmatpush1.msra.mxu0 %v155
    %405 = vmatprep.subr.mxu0 0.0
    %406 = vmatpush1.msra.mxu0 %v156
    %407 = vmatprep.subr.mxu0 0.0
    %408 = vmatpush1.msra.mxu0 %v157
    %409 = vmatprep.subr.mxu0 0.0
    %410 = vmatpush1.msra.mxu0 %v158
    %411 = vmatprep.subr.mxu0 0.0
    %412 = vmatpush1.msra.mxu0 0.0
    %413 = vmatprep.subr.mxu0 0.0
    %414 = vmatpush1.msra.mxu0 0.0
    %415 = vmatprep.subr.mxu0 0.0
    %416 = vmatpush1.msra.mxu0 0.0
    %417 = vmatprep.subr.mxu0 0.0
    %418 = vmatpush1.msra.mxu0 0.0
    %419 = vmatprep.subr.mxu0 0.0
    %420 = vmatpush1.msra.mxu0 0.0
    %421 = vmatprep.subr.mxu0 0.0
    %422 = vmatpush1.msra.mxu0 0.0
    %423 = vmatprep.subr.mxu0 0.0
    %424 = vmatpush1.msra.mxu0 0.0
    %425 = vmatprep.subr.mxu0 0.0
    %426 = vmatpush1.msra.mxu0 0.0
    %427 = vmatprep.subr.mxu0 0.0
    %428 = vmatpush1.msra.mxu0 0.0
    %429 = vmatprep.subr.mxu0 0.0
    %430 = vmatpush1.msra.mxu0 0.0
    %431 = vmatprep.subr.mxu0 0.0
    %432 = vmatpush1.msra.mxu0 0.0
    %433 = vmatprep.subr.mxu0 0.0
    %434 = vmatpush1.msra.mxu0 0.0
    %435 = vmatprep.subr.mxu0 0.0
    %436 = vmatpush1.msra.mxu0 0.0
    %437 = vmatprep.subr.mxu0 0.0
    %438 = vmatpush1.msra.mxu0 0.0
    %439 = vmatprep.subr.mxu0 0.0
    %440 = vmatpush1.msra.mxu0 0.0
    %441 = vmatprep.subr.mxu0 0.0
    %442 = vmatpush1.msra.mxu0 0.0
    %443 = vmatprep.subr.mxu0 0.0
    %444 = vmatpush1.msra.mxu0 0.0
    %445 = vmatprep.subr.mxu0 0.0
    %446 = vmatpush1.msra.mxu0 0.0
    %447 = vmatprep.subr.mxu0 0.0
    %448 = vmatpush1.msra.mxu0 0.0
    %449 = vmatprep.subr.mxu0 0.0
    %450 = vmatpush1.msra.mxu0 0.0
    %451 = vmatprep.subr.mxu0 0.0
    %452 = vmatpush1.msra.mxu0 0.0
    %453 = vmatprep.subr.mxu0 0.0
    %454 = vmatpush1.msra.mxu0 0.0
    %455 = vmatprep.subr.mxu0 0.0
    %456 = vmatpush1.msra.mxu0 0.0
    %457 = vmatprep.subr.mxu0 0.0
    %458 = vmatpush1.msra.mxu0 0.0
    %459 = vmatprep.subr.mxu0 0.0
    %460 = vmatpush1.msra.mxu0 0.0
    %461 = vmatprep.subr.mxu0 0.0
    %462 = vmatpush1.msra.mxu0 0.0
    %463 = vmatprep.subr.mxu0 0.0
    %464 = vmatpush1.msra.mxu0 0.0
    %465 = vmatprep.subr.mxu0 0.0
    %466 = vmatpush1.msra.mxu0 0.0
    %467 = vmatprep.mubr.f32.mxu0 0.0
    %468 = vmatmul.mubr.f32.gmra.mrb[0].mxu0 %v401
    %v469 = vpop.f32.mrb[0].mxu0
    %v470 = vadd.f32 0.0, %v469
    %v471 = vpop.f32.mrb[0].mxu0
    %472 = vdwg.mxu0
    %v474 = vrot.slane %v470, 2
    %v476 = vadd.f32 %v147, %v474
    %v477 = vmax.f32 %v476, 0.0
    %vm478 = vcmask 261126
    %479 = vst.msk [vmem:[#allocation2] sm:$0xc0] %vm478, %v477
    %v481 = vrot.slane %v477, 6
    %v482 = vsel %vm160, %v481, 0
    %484 = vmatprep.subr.mxu0 0.0
    %485 = vmatpush1.msra.mxu0 %v155
    %486 = vmatprep.subr.mxu0 0.0
    %487 = vmatpush1.msra.mxu0 %v156
    %488 = vmatprep.subr.mxu0 0.0
    %489 = vmatpush1.msra.mxu0 %v157
    %490 = vmatprep.subr.mxu0 0.0
    %491 = vmatpush1.msra.mxu0 %v158
    %492 = vmatprep.subr.mxu0 0.0
    %493 = vmatpush1.msra.mxu0 0.0
    %494 = vmatprep.subr.mxu0 0.0
    %495 = vmatpush1.msra.mxu0 0.0
    %496 = vmatprep.subr.mxu0 0.0
    %497 = vmatpush1.msra.mxu0 0.0
    %498 = vmatprep.subr.mxu0 0.0
    %499 = vmatpush1.msra.mxu0 0.0
    %500 = vmatprep.subr.mxu0 0.0
    %501 = vmatpush1.msra.mxu0 0.0
    %502 = vmatprep.subr.mxu0 0.0
    %503 = vmatpush1.msra.mxu0 0.0
    %504 = vmatprep.subr.mxu0 0.0
    %505 = vmatpush1.msra.mxu0 0.0
    %506 = vmatprep.subr.mxu0 0.0
    %507 = vmatpush1.msra.mxu0 0.0
    %508 = vmatprep.subr.mxu0 0.0
    %509 = vmatpush1.msra.mxu0 0.0
    %510 = vmatprep.subr.mxu0 0.0
    %511 = vmatpush1.msra.mxu0 0.0
    %512 = vmatprep.subr.mxu0 0.0
    %513 = vmatpush1.msra.mxu0 0.0
    %514 = vmatprep.subr.mxu0 0.0
    %515 = vmatpush1.msra.mxu0 0.0
    %516 = vmatprep.subr.mxu0 0.0
    %517 = vmatpush1.msra.mxu0 0.0
    %518 = vmatprep.subr.mxu0 0.0
    %519 = vmatpush1.msra.mxu0 0.0
    %520 = vmatprep.subr.mxu0 0.0
    %521 = vmatpush1.msra.mxu0 0.0
    %522 = vmatprep.subr.mxu0 0.0
    %523 = vmatpush1.msra.mxu0 0.0
    %524 = vmatprep.subr.mxu0 0.0
    %525 = vmatpush1.msra.mxu0 0.0
    %526 = vmatprep.subr.mxu0 0.0
    %527 = vmatpush1.msra.mxu0 0.0
    %528 = vmatprep.subr.mxu0 0.0
    %529 = vmatpush1.msra.mxu0 0.0
    %530 = vmatprep.subr.mxu0 0.0
    %531 = vmatpush1.msra.mxu0 0.0
    %532 = vmatprep.subr.mxu0 0.0
    %533 = vmatpush1.msra.mxu0 0.0
    %534 = vmatprep.subr.mxu0 0.0
    %535 = vmatpush1.msra.mxu0 0.0
    %536 = vmatprep.subr.mxu0 0.0
    %537 = vmatpush1.msra.mxu0 0.0
    %538 = vmatprep.subr.mxu0 0.0
    %539 = vmatpush1.msra.mxu0 0.0
    %540 = vmatprep.subr.mxu0 0.0
    %541 = vmatpush1.msra.mxu0 0.0
    %542 = vmatprep.subr.mxu0 0.0
    %543 = vmatpush1.msra.mxu0 0.0
    %544 = vmatprep.subr.mxu0 0.0
    %545 = vmatpush1.msra.mxu0 0.0
    %546 = vmatprep.subr.mxu0 0.0
    %547 = vmatpush1.msra.mxu0 0.0
    %548 = vmatprep.mubr.f32.mxu0 0.0
    %549 = vmatmul.mubr.f32.gmra.mrb[0].mxu0 %v482
    %v550 = vpop.f32.mrb[0].mxu0
    %v551 = vadd.f32 0.0, %v550
    %v552 = vpop.f32.mrb[0].mxu0
    %553 = vdwg.mxu0
    %v554 = vadd.f32 %v152, %v551
    %v555 = vmax.f32 %v554, 0.0
    %556 = vst.msk [vmem:[#allocation2 + $0x8] sm:$0x3] %vm236, %v555
    %v558 = vsel %vm160, %v555, 0
    %560 = vmatprep.subr.mxu0 0.0
    %561 = vmatpush1.msra.mxu0 %v155
    %562 = vmatprep.subr.mxu0 0.0
    %563 = vmatpush1.msra.mxu0 %v156
    %564 = vmatprep.subr.mxu0 0.0
    %565 = vmatpush1.msra.mxu0 %v157
    %566 = vmatprep.subr.mxu0 0.0
    %567 = vmatpush1.msra.mxu0 %v158
    %568 = vmatprep.subr.mxu0 0.0
    %569 = vmatpush1.msra.mxu0 0.0
    %570 = vmatprep.subr.mxu0 0.0
    %571 = vmatpush1.msra.mxu0 0.0
    %572 = vmatprep.subr.mxu0 0.0
    %573 = vmatpush1.msra.mxu0 0.0
    %574 = vmatprep.subr.mxu0 0.0
    %575 = vmatpush1.msra.mxu0 0.0
    %576 = vmatprep.subr.mxu0 0.0
    %577 = vmatpush1.msra.mxu0 0.0
    %578 = vmatprep.subr.mxu0 0.0
    %579 = vmatpush1.msra.mxu0 0.0
    %580 = vmatprep.subr.mxu0 0.0
    %581 = vmatpush1.msra.mxu0 0.0
    %582 = vmatprep.subr.mxu0 0.0
    %583 = vmatpush1.msra.mxu0 0.0
    %584 = vmatprep.subr.mxu0 0.0
    %585 = vmatpush1.msra.mxu0 0.0
    %586 = vmatprep.subr.mxu0 0.0
    %587 = vmatpush1.msra.mxu0 0.0
    %588 = vmatprep.subr.mxu0 0.0
    %589 = vmatpush1.msra.mxu0 0.0
    %590 = vmatprep.subr.mxu0 0.0
    %591 = vmatpush1.msra.mxu0 0.0
    %592 = vmatprep.subr.mxu0 0.0
    %593 = vmatpush1.msra.mxu0 0.0
    %594 = vmatprep.subr.mxu0 0.0
    %595 = vmatpush1.msra.mxu0 0.0
    %596 = vmatprep.subr.mxu0 0.0
    %597 = vmatpush1.msra.mxu0 0.0
    %598 = vmatprep.subr.mxu0 0.0
    %599 = vmatpush1.msra.mxu0 0.0
    %600 = vmatprep.subr.mxu0 0.0
    %601 = vmatpush1.msra.mxu0 0.0
    %602 = vmatprep.subr.mxu0 0.0
    %603 = vmatpush1.msra.mxu0 0.0
    %604 = vmatprep.subr.mxu0 0.0
    %605 = vmatpush1.msra.mxu0 0.0
    %606 = vmatprep.subr.mxu0 0.0
    %607 = vmatpush1.msra.mxu0 0.0
    %608 = vmatprep.subr.mxu0 0.0
    %609 = vmatpush1.msra.mxu0 0.0
    %610 = vmatprep.subr.mxu0 0.0
    %611 = vmatpush1.msra.mxu0 0.0
    %612 = vmatprep.subr.mxu0 0.0
    %613 = vmatpush1.msra.mxu0 0.0
    %614 = vmatprep.subr.mxu0 0.0
    %615 = vmatpush1.msra.mxu0 0.0
    %616 = vmatprep.subr.mxu0 0.0
    %617 = vmatpush1.msra.mxu0 0.0
    %618 = vmatprep.subr.mxu0 0.0
    %619 = vmatpush1.msra.mxu0 0.0
    %620 = vmatprep.subr.mxu0 0.0
    %621 = vmatpush1.msra.mxu0 0.0
    %622 = vmatprep.subr.mxu0 0.0
    %623 = vmatpush1.msra.mxu0 0.0
    %624 = vmatprep.mubr.f32.mxu0 0.0
    %625 = vmatmul.mubr.f32.gmra.mrb[0].mxu0 %v558
    %v626 = vpop.f32.mrb[0].mxu0
    %v627 = vadd.f32 0.0, %v626
    %v628 = vpop.f32.mrb[0].mxu0
    %629 = vdwg.mxu0
    %v631 = vrot.slane %v627, 6
    %v633 = vadd.f32 %v152, %v631
    %v634 = vmax.f32 %v633, 0.0
    %635 = vst.msk [vmem:[#allocation2 + $0x8] sm:$0xc] %vm316, %v634
    %v637 = vrot.slane %v634, 2
    %v638 = vsel %vm160, %v637, 0
    %640 = vmatprep.subr.mxu0 0.0
    %641 = vmatpush1.msra.mxu0 %v155
    %642 = vmatprep.subr.mxu0 0.0
    %643 = vmatpush1.msra.mxu0 %v156
    %644 = vmatprep.subr.mxu0 0.0
    %645 = vmatpush1.msra.mxu0 %v157
    %646 = vmatprep.subr.mxu0 0.0
    %647 = vmatpush1.msra.mxu0 %v158
    %648 = vmatprep.subr.mxu0 0.0
    %649 = vmatpush1.msra.mxu0 0.0
    %650 = vmatprep.subr.mxu0 0.0
    %651 = vmatpush1.msra.mxu0 0.0
    %652 = vmatprep.subr.mxu0 0.0
    %653 = vmatpush1.msra.mxu0 0.0
    %654 = vmatprep.subr.mxu0 0.0
    %655 = vmatpush1.msra.mxu0 0.0
    %656 = vmatprep.subr.mxu0 0.0
    %657 = vmatpush1.msra.mxu0 0.0
    %658 = vmatprep.subr.mxu0 0.0
    %659 = vmatpush1.msra.mxu0 0.0
    %660 = vmatprep.subr.mxu0 0.0
    %661 = vmatpush1.msra.mxu0 0.0
    %662 = vmatprep.subr.mxu0 0.0
    %663 = vmatpush1.msra.mxu0 0.0
    %664 = vmatprep.subr.mxu0 0.0
    %665 = vmatpush1.msra.mxu0 0.0
    %666 = vmatprep.subr.mxu0 0.0
    %667 = vmatpush1.msra.mxu0 0.0
    %668 = vmatprep.subr.mxu0 0.0
    %669 = vmatpush1.msra.mxu0 0.0
    %670 = vmatprep.subr.mxu0 0.0
    %671 = vmatpush1.msra.mxu0 0.0
    %672 = vmatprep.subr.mxu0 0.0
    %673 = vmatpush1.msra.mxu0 0.0
    %674 = vmatprep.subr.mxu0 0.0
    %675 = vmatpush1.msra.mxu0 0.0
    %676 = vmatprep.subr.mxu0 0.0
    %677 = vmatpush1.msra.mxu0 0.0
    %678 = vmatprep.subr.mxu0 0.0
    %679 = vmatpush1.msra.mxu0 0.0
    %680 = vmatprep.subr.mxu0 0.0
    %681 = vmatpush1.msra.mxu0 0.0
    %682 = vmatprep.subr.mxu0 0.0
    %683 = vmatpush1.msra.mxu0 0.0
    %684 = vmatprep.subr.mxu0 0.0
    %685 = vmatpush1.msra.mxu0 0.0
    %686 = vmatprep.subr.mxu0 0.0
    %687 = vmatpush1.msra.mxu0 0.0
    %688 = vmatprep.subr.mxu0 0.0
    %689 = vmatpush1.msra.mxu0 0.0
    %690 = vmatprep.subr.mxu0 0.0
    %691 = vmatpush1.msra.mxu0 0.0
    %692 = vmatprep.subr.mxu0 0.0
    %693 = vmatpush1.msra.mxu0 0.0
    %694 = vmatprep.subr.mxu0 0.0
    %695 = vmatpush1.msra.mxu0 0.0
    %696 = vmatprep.subr.mxu0 0.0
    %697 = vmatpush1.msra.mxu0 0.0
    %698 = vmatprep.subr.mxu0 0.0
    %699 = vmatpush1.msra.mxu0 0.0
    %700 = vmatprep.subr.mxu0 0.0
    %701 = vmatpush1.msra.mxu0 0.0
    %702 = vmatprep.subr.mxu0 0.0
    %703 = vmatpush1.msra.mxu0 0.0
    %704 = vmatprep.mubr.f32.mxu0 0.0
    %705 = vmatmul.mubr.f32.gmra.mrb[0].mxu0 %v638
    %v706 = vpop.f32.mrb[0].mxu0
    %v707 = vadd.f32 0.0, %v706
    %v708 = vpop.f32.mrb[0].mxu0
    %709 = vdwg.mxu0
    %v711 = vrot.slane %v707, 4
    %v713 = vadd.f32 %v152, %v711
    %v714 = vmax.f32 %v713, 0.0
    %715 = vst.msk [vmem:[#allocation2 + $0x8] sm:$0x30] %vm397, %v714
    %v717 = vrot.slane %v714, 4
    %v718 = vsel %vm160, %v717, 0
    %720 = vmatprep.subr.mxu0 0.0
    %721 = vmatpush1.msra.mxu0 %v155
    %722 = vmatprep.subr.mxu0 0.0
    %723 = vmatpush1.msra.mxu0 %v156
    %724 = vmatprep.subr.mxu0 0.0
    %725 = vmatpush1.msra.mxu0 %v157
    %726 = vmatprep.subr.mxu0 0.0
    %727 = vmatpush1.msra.mxu0 %v158
    %728 = vmatprep.subr.mxu0 0.0
    %729 = vmatpush1.msra.mxu0 0.0
    %730 = vmatprep.subr.mxu0 0.0
    %731 = vmatpush1.msra.mxu0 0.0
    %732 = vmatprep.subr.mxu0 0.0
    %733 = vmatpush1.msra.mxu0 0.0
    %734 = vmatprep.subr.mxu0 0.0
    %735 = vmatpush1.msra.mxu0 0.0
    %736 = vmatprep.subr.mxu0 0.0
    %737 = vmatpush1.msra.mxu0 0.0
    %738 = vmatprep.subr.mxu0 0.0
    %739 = vmatpush1.msra.mxu0 0.0
    %740 = vmatprep.subr.mxu0 0.0
    %741 = vmatpush1.msra.mxu0 0.0
    %742 = vmatprep.subr.mxu0 0.0
    %743 = vmatpush1.msra.mxu0 0.0
    %744 = vmatprep.subr.mxu0 0.0
    %745 = vmatpush1.msra.mxu0 0.0
    %746 = vmatprep.subr.mxu0 0.0
    %747 = vmatpush1.msra.mxu0 0.0
    %748 = vmatprep.subr.mxu0 0.0
    %749 = vmatpush1.msra.mxu0 0.0
    %750 = vmatprep.subr.mxu0 0.0
    %751 = vmatpush1.msra.mxu0 0.0
    %752 = vmatprep.subr.mxu0 0.0
    %753 = vmatpush1.msra.mxu0 0.0
    %754 = vmatprep.subr.mxu0 0.0
    %755 = vmatpush1.msra.mxu0 0.0
    %756 = vmatprep.subr.mxu0 0.0
    %757 = vmatpush1.msra.mxu0 0.0
    %758 = vmatprep.subr.mxu0 0.0
    %759 = vmatpush1.msra.mxu0 0.0
    %760 = vmatprep.subr.mxu0 0.0
    %761 = vmatpush1.msra.mxu0 0.0
    %762 = vmatprep.subr.mxu0 0.0
    %763 = vmatpush1.msra.mxu0 0.0
    %764 = vmatprep.subr.mxu0 0.0
    %765 = vmatpush1.msra.mxu0 0.0
    %766 = vmatprep.subr.mxu0 0.0
    %767 = vmatpush1.msra.mxu0 0.0
    %768 = vmatprep.subr.mxu0 0.0
    %769 = vmatpush1.msra.mxu0 0.0
    %770 = vmatprep.subr.mxu0 0.0
    %771 = vmatpush1.msra.mxu0 0.0
    %772 = vmatprep.subr.mxu0 0.0
    %773 = vmatpush1.msra.mxu0 0.0
    %774 = vmatprep.subr.mxu0 0.0
    %775 = vmatpush1.msra.mxu0 0.0
    %776 = vmatprep.subr.mxu0 0.0
    %777 = vmatpush1.msra.mxu0 0.0
    %778 = vmatprep.subr.mxu0 0.0
    %779 = vmatpush1.msra.mxu0 0.0
    %780 = vmatprep.subr.mxu0 0.0
    %781 = vmatpush1.msra.mxu0 0.0
    %782 = vmatprep.subr.mxu0 0.0
    %783 = vmatpush1.msra.mxu0 0.0
    %784 = vmatprep.mubr.f32.mxu0 0.0
    %785 = vmatmul.mubr.f32.gmra.mrb[0].mxu0 %v718
    %v786 = vpop.f32.mrb[0].mxu0
    %v787 = vadd.f32 0.0, %v786
    %v788 = vpop.f32.mrb[0].mxu0
    %789 = vdwg.mxu0
    %v791 = vrot.slane %v787, 2
    %v793 = vadd.f32 %v152, %v791
    %v794 = vmax.f32 %v793, 0.0
    %795 = vst.msk [vmem:[#allocation2 + $0x8] sm:$0xc0] %vm478, %v794
    %v796 = vld [vmem:[#allocation2] sm:$0xff]
    %v797 = vld [vmem:[#allocation2 + $0x8] sm:$0xff]
    %v798 = vld [vmem:[%s5] sm:$0xff]
    %v799 = vld [vmem:[%s5 + $0x8] sm:$0xff]
    %v800 = vld [vmem:[%s5 + $0x10] sm:$0xff]
    %v801 = vld [vmem:[%s5 + $0x18] sm:$0xff]
    %v802 = vld [vmem:[%s7] sm:$0x1]
    %v804 = vlaneseq
    %v805 = vshrl.u32 %v804, 7
    %v806 = vsub.s32 0, %v805
    %v807 = vrot.slane %v802, %v806
    %v810 = vsel %vm160, %v796, 0
    %v813 = vsel %vm160, %v797, 0
    %815 = vmatprep.subr.mxu0 0.0
    %816 = vmatpush1.msra.mxu0 %v798
    %817 = vmatprep.subr.mxu0 0.0
    %818 = vmatpush1.msra.mxu0 %v799
    %819 = vmatprep.subr.mxu0 0.0
    %820 = vmatpush1.msra.mxu0 %v800
    %821 = vmatprep.subr.mxu0 0.0
    %822 = vmatpush1.msra.mxu0 %v801
    %823 = vmatprep.subr.mxu0 0.0
    %824 = vmatpush1.msra.mxu0 0.0
    %825 = vmatprep.subr.mxu0 0.0
    %826 = vmatpush1.msra.mxu0 0.0
    %827 = vmatprep.subr.mxu0 0.0
    %828 = vmatpush1.msra.mxu0 0.0
    %829 = vmatprep.subr.mxu0 0.0
    %830 = vmatpush1.msra.mxu0 0.0
    %831 = vmatprep.subr.mxu0 0.0
    %832 = vmatpush1.msra.mxu0 0.0
    %833 = vmatprep.subr.mxu0 0.0
    %834 = vmatpush1.msra.mxu0 0.0
    %835 = vmatprep.subr.mxu0 0.0
    %836 = vmatpush1.msra.mxu0 0.0
    %837 = vmatprep.subr.mxu0 0.0
    %838 = vmatpush1.msra.mxu0 0.0
    %839 = vmatprep.subr.mxu0 0.0
    %840 = vmatpush1.msra.mxu0 0.0
    %841 = vmatprep.subr.mxu0 0.0
    %842 = vmatpush1.msra.mxu0 0.0
    %843 = vmatprep.subr.mxu0 0.0
    %844 = vmatpush1.msra.mxu0 0.0
    %845 = vmatprep.subr.mxu0 0.0
    %846 = vmatpush1.msra.mxu0 0.0
    %847 = vmatprep.subr.mxu0 0.0
    %848 = vmatpush1.msra.mxu0 0.0
    %849 = vmatprep.subr.mxu0 0.0
    %850 = vmatpush1.msra.mxu0 0.0
    %851 = vmatprep.subr.mxu0 0.0
    %852 = vmatpush1.msra.mxu0 0.0
    %853 = vmatprep.subr.mxu0 0.0
    %854 = vmatpush1.msra.mxu0 0.0
    %855 = vmatprep.subr.mxu0 0.0
    %856 = vmatpush1.msra.mxu0 0.0
    %857 = vmatprep.subr.mxu0 0.0
    %858 = vmatpush1.msra.mxu0 0.0
    %859 = vmatprep.subr.mxu0 0.0
    %860 = vmatpush1.msra.mxu0 0.0
    %861 = vmatprep.subr.mxu0 0.0
    %862 = vmatpush1.msra.mxu0 0.0
    %863 = vmatprep.subr.mxu0 0.0
    %864 = vmatpush1.msra.mxu0 0.0
    %865 = vmatprep.subr.mxu0 0.0
    %866 = vmatpush1.msra.mxu0 0.0
    %867 = vmatprep.subr.mxu0 0.0
    %868 = vmatpush1.msra.mxu0 0.0
    %869 = vmatprep.subr.mxu0 0.0
    %870 = vmatpush1.msra.mxu0 0.0
    %871 = vmatprep.subr.mxu0 0.0
    %872 = vmatpush1.msra.mxu0 0.0
    %873 = vmatprep.subr.mxu0 0.0
    %874 = vmatpush1.msra.mxu0 0.0
    %875 = vmatprep.subr.mxu0 0.0
    %876 = vmatpush1.msra.mxu0 0.0
    %877 = vmatprep.subr.mxu0 0.0
    %878 = vmatpush1.msra.mxu0 0.0
    %879 = vmatprep.mubr.f32.mxu0 0.0
    %880 = vmatmul.mubr.f32.gmra.mrb[0].mxu0 %v810
    %v881 = vpop.f32.mrb[0].mxu0
    %v882 = vadd.f32 %v807, %v881
    %v883 = vpop.f32.mrb[0].mxu0
    %884 = vmatprep.mubr.f32.mxu0 0.0
    %885 = vmatmul.mubr.f32.gmra.mrb[0].mxu0 %v813
    %v886 = vpop.f32.mrb[0].mxu0
    %v887 = vadd.f32 %v807, %v886
    %v888 = vpop.f32.mrb[0].mxu0
    %889 = vdwg.mxu0
    %v890 = vld [vmem:[%s6] sm:$0xff]
    %v891 = vld [vmem:[%s6 + $0x8] sm:$0xff]
    %v892 = vld [vmem:[%s6 + $0x10] sm:$0xff]
    %v893 = vld [vmem:[%s6 + $0x18] sm:$0xff]
    %s894 = scalar_lea.vmem %s1, 2
    %v895 = vld [vmem:[%s894] sm:$0x3]
    %v897 = vsel %vm160, %v895, 0
    %899 = vmatprep.subr.mxu0 0.0
    %900 = vmatpush1.msra.mxu0 %v890
    %901 = vmatprep.subr.mxu0 0.0
    %902 = vmatpush1.msra.mxu0 %v891
    %903 = vmatprep.subr.mxu0 0.0
    %904 = vmatpush1.msra.mxu0 %v892
    %905 = vmatprep.subr.mxu0 0.0
    %906 = vmatpush1.msra.mxu0 %v893
    %907 = vmatprep.subr.mxu0 0.0
    %908 = vmatpush1.msra.mxu0 0.0
    %909 = vmatprep.subr.mxu0 0.0
    %910 = vmatpush1.msra.mxu0 0.0
    %911 = vmatprep.subr.mxu0 0.0
    %912 = vmatpush1.msra.mxu0 0.0
    %913 = vmatprep.subr.mxu0 0.0
    %914 = vmatpush1.msra.mxu0 0.0
    %915 = vmatprep.subr.mxu0 0.0
    %916 = vmatpush1.msra.mxu0 0.0
    %917 = vmatprep.subr.mxu0 0.0
    %918 = vmatpush1.msra.mxu0 0.0
    %919 = vmatprep.subr.mxu0 0.0
    %920 = vmatpush1.msra.mxu0 0.0
    %921 = vmatprep.subr.mxu0 0.0
    %922 = vmatpush1.msra.mxu0 0.0
    %923 = vmatprep.subr.mxu0 0.0
    %924 = vmatpush1.msra.mxu0 0.0
    %925 = vmatprep.subr.mxu0 0.0
    %926 = vmatpush1.msra.mxu0 0.0
    %927 = vmatprep.subr.mxu0 0.0
    %928 = vmatpush1.msra.mxu0 0.0
    %929 = vmatprep.subr.mxu0 0.0
    %930 = vmatpush1.msra.mxu0 0.0
    %931 = vmatprep.subr.mxu0 0.0
    %932 = vmatpush1.msra.mxu0 0.0
    %933 = vmatprep.subr.mxu0 0.0
    %934 = vmatpush1.msra.mxu0 0.0
    %935 = vmatprep.subr.mxu0 0.0
    %936 = vmatpush1.msra.mxu0 0.0
    %937 = vmatprep.subr.mxu0 0.0
    %938 = vmatpush1.msra.mxu0 0.0
    %939 = vmatprep.subr.mxu0 0.0
    %940 = vmatpush1.msra.mxu0 0.0
    %941 = vmatprep.subr.mxu0 0.0
    %942 = vmatpush1.msra.mxu0 0.0
    %943 = vmatprep.subr.mxu0 0.0
    %944 = vmatpush1.msra.mxu0 0.0
    %945 = vmatprep.subr.mxu0 0.0
    %946 = vmatpush1.msra.mxu0 0.0
    %947 = vmatprep.subr.mxu0 0.0
    %948 = vmatpush1.msra.mxu0 0.0
    %949 = vmatprep.subr.mxu0 0.0
    %950 = vmatpush1.msra.mxu0 0.0
    %951 = vmatprep.subr.mxu0 0.0
    %952 = vmatpush1.msra.mxu0 0.0
    %953 = vmatprep.subr.mxu0 0.0
    %954 = vmatpush1.msra.mxu0 0.0
    %955 = vmatprep.subr.mxu0 0.0
    %956 = vmatpush1.msra.mxu0 0.0
    %957 = vmatprep.subr.mxu0 0.0
    %958 = vmatpush1.msra.mxu0 0.0
    %959 = vmatprep.subr.mxu0 0.0
    %960 = vmatpush1.msra.mxu0 0.0
    %961 = vmatprep.subr.mxu0 0.0
    %962 = vmatpush1.msra.mxu0 0.0
    %963 = vmatprep.mubr.f32.mxu0 0.0
    %964 = vmatmul.mubr.f32.gmra.mrb[0].mxu0 %v897
    %v965 = vpop.f32.mrb[0].mxu0
    %v966 = vadd.f32 0.0, %v965
    %v967 = vpop.f32.mrb[0].mxu0
    %968 = vdwg.mxu0
    %v969 = vadd.f32 %v882, %v966
    %v970 = vmax.f32 %v969, 0.0
    %v972 = vsel %vm160, %v970, 0
    %974 = vmatprep.subr.mxu0 0.0
    %975 = vmatpush1.msra.mxu0 %v890
    %976 = vmatprep.subr.mxu0 0.0
    %977 = vmatpush1.msra.mxu0 %v891
    %978 = vmatprep.subr.mxu0 0.0
    %979 = vmatpush1.msra.mxu0 %v892
    %980 = vmatprep.subr.mxu0 0.0
    %981 = vmatpush1.msra.mxu0 %v893
    %982 = vmatprep.subr.mxu0 0.0
    %983 = vmatpush1.msra.mxu0 0.0
    %984 = vmatprep.subr.mxu0 0.0
    %985 = vmatpush1.msra.mxu0 0.0
    %986 = vmatprep.subr.mxu0 0.0
    %987 = vmatpush1.msra.mxu0 0.0
    %988 = vmatprep.subr.mxu0 0.0
    %989 = vmatpush1.msra.mxu0 0.0
    %990 = vmatprep.subr.mxu0 0.0
    %991 = vmatpush1.msra.mxu0 0.0
    %992 = vmatprep.subr.mxu0 0.0
    %993 = vmatpush1.msra.mxu0 0.0
    %994 = vmatprep.subr.mxu0 0.0
    %995 = vmatpush1.msra.mxu0 0.0
    %996 = vmatprep.subr.mxu0 0.0
    %997 = vmatpush1.msra.mxu0 0.0
    %998 = vmatprep.subr.mxu0 0.0
    %999 = vmatpush1.msra.mxu0 0.0
    %1000 = vmatprep.subr.mxu0 0.0
    %1001 = vmatpush1.msra.mxu0 0.0
    %1002 = vmatprep.subr.mxu0 0.0
    %1003 = vmatpush1.msra.mxu0 0.0
    %1004 = vmatprep.subr.mxu0 0.0
    %1005 = vmatpush1.msra.mxu0 0.0
    %1006 = vmatprep.subr.mxu0 0.0
    %1007 = vmatpush1.msra.mxu0 0.0
    %1008 = vmatprep.subr.mxu0 0.0
    %1009 = vmatpush1.msra.mxu0 0.0
    %1010 = vmatprep.subr.mxu0 0.0
    %1011 = vmatpush1.msra.mxu0 0.0
    %1012 = vmatprep.subr.mxu0 0.0
    %1013 = vmatpush1.msra.mxu0 0.0
    %1014 = vmatprep.subr.mxu0 0.0
    %1015 = vmatpush1.msra.mxu0 0.0
    %1016 = vmatprep.subr.mxu0 0.0
    %1017 = vmatpush1.msra.mxu0 0.0
    %1018 = vmatprep.subr.mxu0 0.0
    %1019 = vmatpush1.msra.mxu0 0.0
    %1020 = vmatprep.subr.mxu0 0.0
    %1021 = vmatpush1.msra.mxu0 0.0
    %1022 = vmatprep.subr.mxu0 0.0
    %1023 = vmatpush1.msra.mxu0 0.0
    %1024 = vmatprep.subr.mxu0 0.0
    %1025 = vmatpush1.msra.mxu0 0.0
    %1026 = vmatprep.subr.mxu0 0.0
    %1027 = vmatpush1.msra.mxu0 0.0
    %1028 = vmatprep.subr.mxu0 0.0
    %1029 = vmatpush1.msra.mxu0 0.0
    %1030 = vmatprep.subr.mxu0 0.0
    %1031 = vmatpush1.msra.mxu0 0.0
    %1032 = vmatprep.subr.mxu0 0.0
    %1033 = vmatpush1.msra.mxu0 0.0
    %1034 = vmatprep.subr.mxu0 0.0
    %1035 = vmatpush1.msra.mxu0 0.0
    %1036 = vmatprep.subr.mxu0 0.0
    %1037 = vmatpush1.msra.mxu0 0.0
    %1038 = vmatprep.mubr.f32.mxu0 0.0
    %1039 = vmatmul.mubr.f32.gmra.mrb[0].mxu0 %v972
    %v1040 = vpop.f32.mrb[0].mxu0
    %v1041 = vadd.f32 0.0, %v1040
    %v1042 = vpop.f32.mrb[0].mxu0
    %1043 = vdwg.mxu0
    %v1045 = vrot.slane %v1041, 6
    %v1047 = vadd.f32 %v882, %v1045
    %v1048 = vmax.f32 %v1047, 0.0
    %v1050 = vrot.slane %v1048, 2
    %v1051 = vsel %vm160, %v1050, 0
    %1053 = vmatprep.subr.mxu0 0.0
    %1054 = vmatpush1.msra.mxu0 %v890
    %1055 = vmatprep.subr.mxu0 0.0
    %1056 = vmatpush1.msra.mxu0 %v891
    %1057 = vmatprep.subr.mxu0 0.0
    %1058 = vmatpush1.msra.mxu0 %v892
    %1059 = vmatprep.subr.mxu0 0.0
    %1060 = vmatpush1.msra.mxu0 %v893
    %1061 = vmatprep.subr.mxu0 0.0
    %1062 = vmatpush1.msra.mxu0 0.0
    %1063 = vmatprep.subr.mxu0 0.0
    %1064 = vmatpush1.msra.mxu0 0.0
    %1065 = vmatprep.subr.mxu0 0.0
    %1066 = vmatpush1.msra.mxu0 0.0
    %1067 = vmatprep.subr.mxu0 0.0
    %1068 = vmatpush1.msra.mxu0 0.0
    %1069 = vmatprep.subr.mxu0 0.0
    %1070 = vmatpush1.msra.mxu0 0.0
    %1071 = vmatprep.subr.mxu0 0.0
    %1072 = vmatpush1.msra.mxu0 0.0
    %1073 = vmatprep.subr.mxu0 0.0
    %1074 = vmatpush1.msra.mxu0 0.0
    %1075 = vmatprep.subr.mxu0 0.0
    %1076 = vmatpush1.msra.mxu0 0.0
    %1077 = vmatprep.subr.mxu0 0.0
    %1078 = vmatpush1.msra.mxu0 0.0
    %1079 = vmatprep.subr.mxu0 0.0
    %1080 = vmatpush1.msra.mxu0 0.0
    %1081 = vmatprep.subr.mxu0 0.0
    %1082 = vmatpush1.msra.mxu0 0.0
    %1083 = vmatprep.subr.mxu0 0.0
    %1084 = vmatpush1.msra.mxu0 0.0
    %1085 = vmatprep.subr.mxu0 0.0
    %1086 = vmatpush1.msra.mxu0 0.0
    %1087 = vmatprep.subr.mxu0 0.0
    %1088 = vmatpush1.msra.mxu0 0.0
    %1089 = vmatprep.subr.mxu0 0.0
    %1090 = vmatpush1.msra.mxu0 0.0
    %1091 = vmatprep.subr.mxu0 0.0
    %1092 = vmatpush1.msra.mxu0 0.0
    %1093 = vmatprep.subr.mxu0 0.0
    %1094 = vmatpush1.msra.mxu0 0.0
    %1095 = vmatprep.subr.mxu0 0.0
    %1096 = vmatpush1.msra.mxu0 0.0
    %1097 = vmatprep.subr.mxu0 0.0
    %1098 = vmatpush1.msra.mxu0 0.0
    %1099 = vmatprep.subr.mxu0 0.0
    %1100 = vmatpush1.msra.mxu0 0.0
    %1101 = vmatprep.subr.mxu0 0.0
    %1102 = vmatpush1.msra.mxu0 0.0
    %1103 = vmatprep.subr.mxu0 0.0
    %1104 = vmatpush1.msra.mxu0 0.0
    %1105 = vmatprep.subr.mxu0 0.0
    %1106 = vmatpush1.msra.mxu0 0.0
    %1107 = vmatprep.subr.mxu0 0.0
    %1108 = vmatpush1.msra.mxu0 0.0
    %1109 = vmatprep.subr.mxu0 0.0
    %1110 = vmatpush1.msra.mxu0 0.0
    %1111 = vmatprep.subr.mxu0 0.0
    %1112 = vmatpush1.msra.mxu0 0.0
    %1113 = vmatprep.subr.mxu0 0.0
    %1114 = vmatpush1.msra.mxu0 0.0
    %1115 = vmatprep.subr.mxu0 0.0
    %1116 = vmatpush1.msra.mxu0 0.0
    %1117 = vmatprep.mubr.f32.mxu0 0.0
    %1118 = vmatmul.mubr.f32.gmra.mrb[0].mxu0 %v1051
    %v1119 = vpop.f32.mrb[0].mxu0
    %v1120 = vadd.f32 0.0, %v1119
    %v1121 = vpop.f32.mrb[0].mxu0
    %1122 = vdwg.mxu0
    %v1124 = vrot.slane %v1120, 4
    %v1126 = vadd.f32 %v882, %v1124
    %v1127 = vmax.f32 %v1126, 0.0
    %v1129 = vrot.slane %v1127, 4
    %v1130 = vsel %vm160, %v1129, 0
    %1132 = vmatprep.subr.mxu0 0.0
    %1133 = vmatpush1.msra.mxu0 %v890
    %1134 = vmatprep.subr.mxu0 0.0
    %1135 = vmatpush1.msra.mxu0 %v891
    %1136 = vmatprep.subr.mxu0 0.0
    %1137 = vmatpush1.msra.mxu0 %v892
    %1138 = vmatprep.subr.mxu0 0.0
    %1139 = vmatpush1.msra.mxu0 %v893
    %1140 = vmatprep.subr.mxu0 0.0
    %1141 = vmatpush1.msra.mxu0 0.0
    %1142 = vmatprep.subr.mxu0 0.0
    %1143 = vmatpush1.msra.mxu0 0.0
    %1144 = vmatprep.subr.mxu0 0.0
    %1145 = vmatpush1.msra.mxu0 0.0
    %1146 = vmatprep.subr.mxu0 0.0
    %1147 = vmatpush1.msra.mxu0 0.0
    %1148 = vmatprep.subr.mxu0 0.0
    %1149 = vmatpush1.msra.mxu0 0.0
    %1150 = vmatprep.subr.mxu0 0.0
    %1151 = vmatpush1.msra.mxu0 0.0
    %1152 = vmatprep.subr.mxu0 0.0
    %1153 = vmatpush1.msra.mxu0 0.0
    %1154 = vmatprep.subr.mxu0 0.0
    %1155 = vmatpush1.msra.mxu0 0.0
    %1156 = vmatprep.subr.mxu0 0.0
    %1157 = vmatpush1.msra.mxu0 0.0
    %1158 = vmatprep.subr.mxu0 0.0
    %1159 = vmatpush1.msra.mxu0 0.0
    %1160 = vmatprep.subr.mxu0 0.0
    %1161 = vmatpush1.msra.mxu0 0.0
    %1162 = vmatprep.subr.mxu0 0.0
    %1163 = vmatpush1.msra.mxu0 0.0
    %1164 = vmatprep.subr.mxu0 0.0
    %1165 = vmatpush1.msra.mxu0 0.0
    %1166 = vmatprep.subr.mxu0 0.0
    %1167 = vmatpush1.msra.mxu0 0.0
    %1168 = vmatprep.subr.mxu0 0.0
    %1169 = vmatpush1.msra.mxu0 0.0
    %1170 = vmatprep.subr.mxu0 0.0
    %1171 = vmatpush1.msra.mxu0 0.0
    %1172 = vmatprep.subr.mxu0 0.0
    %1173 = vmatpush1.msra.mxu0 0.0
    %1174 = vmatprep.subr.mxu0 0.0
    %1175 = vmatpush1.msra.mxu0 0.0
    %1176 = vmatprep.subr.mxu0 0.0
    %1177 = vmatpush1.msra.mxu0 0.0
    %1178 = vmatprep.subr.mxu0 0.0
    %1179 = vmatpush1.msra.mxu0 0.0
    %1180 = vmatprep.subr.mxu0 0.0
    %1181 = vmatpush1.msra.mxu0 0.0
    %1182 = vmatprep.subr.mxu0 0.0
    %1183 = vmatpush1.msra.mxu0 0.0
    %1184 = vmatprep.subr.mxu0 0.0
    %1185 = vmatpush1.msra.mxu0 0.0
    %1186 = vmatprep.subr.mxu0 0.0
    %1187 = vmatpush1.msra.mxu0 0.0
    %1188 = vmatprep.subr.mxu0 0.0
    %1189 = vmatpush1.msra.mxu0 0.0
    %1190 = vmatprep.subr.mxu0 0.0
    %1191 = vmatpush1.msra.mxu0 0.0
    %1192 = vmatprep.subr.mxu0 0.0
    %1193 = vmatpush1.msra.mxu0 0.0
    %1194 = vmatprep.subr.mxu0 0.0
    %1195 = vmatpush1.msra.mxu0 0.0
    %1196 = vmatprep.mubr.f32.mxu0 0.0
    %1197 = vmatmul.mubr.f32.gmra.mrb[0].mxu0 %v1130
    %v1198 = vpop.f32.mrb[0].mxu0
    %v1199 = vadd.f32 0.0, %v1198
    %v1200 = vpop.f32.mrb[0].mxu0
    %1201 = vdwg.mxu0
    %v1203 = vrot.slane %v1199, 2
    %v1205 = vadd.f32 %v882, %v1203
    %v1206 = vmax.f32 %v1205, 0.0
    %v1208 = vrot.slane %v1206, 6
    %v1209 = vsel %vm160, %v1208, 0
    %1211 = vmatprep.subr.mxu0 0.0
    %1212 = vmatpush1.msra.mxu0 %v890
    %1213 = vmatprep.subr.mxu0 0.0
    %1214 = vmatpush1.msra.mxu0 %v891
    %1215 = vmatprep.subr.mxu0 0.0
    %1216 = vmatpush1.msra.mxu0 %v892
    %1217 = vmatprep.subr.mxu0 0.0
    %1218 = vmatpush1.msra.mxu0 %v893
    %1219 = vmatprep.subr.mxu0 0.0
    %1220 = vmatpush1.msra.mxu0 0.0
    %1221 = vmatprep.subr.mxu0 0.0
    %1222 = vmatpush1.msra.mxu0 0.0
    %1223 = vmatprep.subr.mxu0 0.0
    %1224 = vmatpush1.msra.mxu0 0.0
    %1225 = vmatprep.subr.mxu0 0.0
    %1226 = vmatpush1.msra.mxu0 0.0
    %1227 = vmatprep.subr.mxu0 0.0
    %1228 = vmatpush1.msra.mxu0 0.0
    %1229 = vmatprep.subr.mxu0 0.0
    %1230 = vmatpush1.msra.mxu0 0.0
    %1231 = vmatprep.subr.mxu0 0.0
    %1232 = vmatpush1.msra.mxu0 0.0
    %1233 = vmatprep.subr.mxu0 0.0
    %1234 = vmatpush1.msra.mxu0 0.0
    %1235 = vmatprep.subr.mxu0 0.0
    %1236 = vmatpush1.msra.mxu0 0.0
    %1237 = vmatprep.subr.mxu0 0.0
    %1238 = vmatpush1.msra.mxu0 0.0
    %1239 = vmatprep.subr.mxu0 0.0
    %1240 = vmatpush1.msra.mxu0 0.0
    %1241 = vmatprep.subr.mxu0 0.0
    %1242 = vmatpush1.msra.mxu0 0.0
    %1243 = vmatprep.subr.mxu0 0.0
    %1244 = vmatpush1.msra.mxu0 0.0
    %1245 = vmatprep.subr.mxu0 0.0
    %1246 = vmatpush1.msra.mxu0 0.0
    %1247 = vmatprep.subr.mxu0 0.0
    %1248 = vmatpush1.msra.mxu0 0.0
    %1249 = vmatprep.subr.mxu0 0.0
    %1250 = vmatpush1.msra.mxu0 0.0
    %1251 = vmatprep.subr.mxu0 0.0
    %1252 = vmatpush1.msra.mxu0 0.0
    %1253 = vmatprep.subr.mxu0 0.0
    %1254 = vmatpush1.msra.mxu0 0.0
    %1255 = vmatprep.subr.mxu0 0.0
    %1256 = vmatpush1.msra.mxu0 0.0
    %1257 = vmatprep.subr.mxu0 0.0
    %1258 = vmatpush1.msra.mxu0 0.0
    %1259 = vmatprep.subr.mxu0 0.0
    %1260 = vmatpush1.msra.mxu0 0.0
    %1261 = vmatprep.subr.mxu0 0.0
    %1262 = vmatpush1.msra.mxu0 0.0
    %1263 = vmatprep.subr.mxu0 0.0
    %1264 = vmatpush1.msra.mxu0 0.0
    %1265 = vmatprep.subr.mxu0 0.0
    %1266 = vmatpush1.msra.mxu0 0.0
    %1267 = vmatprep.subr.mxu0 0.0
    %1268 = vmatpush1.msra.mxu0 0.0
    %1269 = vmatprep.subr.mxu0 0.0
    %1270 = vmatpush1.msra.mxu0 0.0
    %1271 = vmatprep.subr.mxu0 0.0
    %1272 = vmatpush1.msra.mxu0 0.0
    %1273 = vmatprep.subr.mxu0 0.0
    %1274 = vmatpush1.msra.mxu0 0.0
    %1275 = vmatprep.mubr.f32.mxu0 0.0
    %1276 = vmatmul.mubr.f32.gmra.mrb[0].mxu0 %v1209
    %v1277 = vpop.f32.mrb[0].mxu0
    %v1278 = vadd.f32 0.0, %v1277
    %v1279 = vpop.f32.mrb[0].mxu0
    %1280 = vdwg.mxu0
    %v1281 = vadd.f32 %v887, %v1278
    %v1282 = vmax.f32 %v1281, 0.0
    %v1284 = vsel %vm160, %v1282, 0
    %1286 = vmatprep.subr.mxu0 0.0
    %1287 = vmatpush1.msra.mxu0 %v890
    %1288 = vmatprep.subr.mxu0 0.0
    %1289 = vmatpush1.msra.mxu0 %v891
    %1290 = vmatprep.subr.mxu0 0.0
    %1291 = vmatpush1.msra.mxu0 %v892
    %1292 = vmatprep.subr.mxu0 0.0
    %1293 = vmatpush1.msra.mxu0 %v893
    %1294 = vmatprep.subr.mxu0 0.0
    %1295 = vmatpush1.msra.mxu0 0.0
    %1296 = vmatprep.subr.mxu0 0.0
    %1297 = vmatpush1.msra.mxu0 0.0
    %1298 = vmatprep.subr.mxu0 0.0
    %1299 = vmatpush1.msra.mxu0 0.0
    %1300 = vmatprep.subr.mxu0 0.0
    %1301 = vmatpush1.msra.mxu0 0.0
    %1302 = vmatprep.subr.mxu0 0.0
    %1303 = vmatpush1.msra.mxu0 0.0
    %1304 = vmatprep.subr.mxu0 0.0
    %1305 = vmatpush1.msra.mxu0 0.0
    %1306 = vmatprep.subr.mxu0 0.0
    %1307 = vmatpush1.msra.mxu0 0.0
    %1308 = vmatprep.subr.mxu0 0.0
    %1309 = vmatpush1.msra.mxu0 0.0
    %1310 = vmatprep.subr.mxu0 0.0
    %1311 = vmatpush1.msra.mxu0 0.0
    %1312 = vmatprep.subr.mxu0 0.0
    %1313 = vmatpush1.msra.mxu0 0.0
    %1314 = vmatprep.subr.mxu0 0.0
    %1315 = vmatpush1.msra.mxu0 0.0
    %1316 = vmatprep.subr.mxu0 0.0
    %1317 = vmatpush1.msra.mxu0 0.0
    %1318 = vmatprep.subr.mxu0 0.0
    %1319 = vmatpush1.msra.mxu0 0.0
    %1320 = vmatprep.subr.mxu0 0.0
    %1321 = vmatpush1.msra.mxu0 0.0
    %1322 = vmatprep.subr.mxu0 0.0
    %1323 = vmatpush1.msra.mxu0 0.0
    %1324 = vmatprep.subr.mxu0 0.0
    %1325 = vmatpush1.msra.mxu0 0.0
    %1326 = vmatprep.subr.mxu0 0.0
    %1327 = vmatpush1.msra.mxu0 0.0
    %1328 = vmatprep.subr.mxu0 0.0
    %1329 = vmatpush1.msra.mxu0 0.0
    %1330 = vmatprep.subr.mxu0 0.0
    %1331 = vmatpush1.msra.mxu0 0.0
    %1332 = vmatprep.subr.mxu0 0.0
    %1333 = vmatpush1.msra.mxu0 0.0
    %1334 = vmatprep.subr.mxu0 0.0
    %1335 = vmatpush1.msra.mxu0 0.0
    %1336 = vmatprep.subr.mxu0 0.0
    %1337 = vmatpush1.msra.mxu0 0.0
    %1338 = vmatprep.subr.mxu0 0.0
    %1339 = vmatpush1.msra.mxu0 0.0
    %1340 = vmatprep.subr.mxu0 0.0
    %1341 = vmatpush1.msra.mxu0 0.0
    %1342 = vmatprep.subr.mxu0 0.0
    %1343 = vmatpush1.msra.mxu0 0.0
    %1344 = vmatprep.subr.mxu0 0.0
    %1345 = vmatpush1.msra.mxu0 0.0
    %1346 = vmatprep.subr.mxu0 0.0
    %1347 = vmatpush1.msra.mxu0 0.0
    %1348 = vmatprep.subr.mxu0 0.0
    %1349 = vmatpush1.msra.mxu0 0.0
    %1350 = vmatprep.mubr.f32.mxu0 0.0
    %1351 = vmatmul.mubr.f32.gmra.mrb[0].mxu0 %v1284
    %v1352 = vpop.f32.mrb[0].mxu0
    %v1353 = vadd.f32 0.0, %v1352
    %v1354 = vpop.f32.mrb[0].mxu0
    %1355 = vdwg.mxu0
    %v1357 = vrot.slane %v1353, 6
    %v1359 = vadd.f32 %v887, %v1357
    %v1360 = vmax.f32 %v1359, 0.0
    %v1362 = vrot.slane %v1360, 2
    %v1363 = vsel %vm160, %v1362, 0
    %1365 = vmatprep.subr.mxu0 0.0
    %1366 = vmatpush1.msra.mxu0 %v890
    %1367 = vmatprep.subr.mxu0 0.0
    %1368 = vmatpush1.msra.mxu0 %v891
    %1369 = vmatprep.subr.mxu0 0.0
    %1370 = vmatpush1.msra.mxu0 %v892
    %1371 = vmatprep.subr.mxu0 0.0
    %1372 = vmatpush1.msra.mxu0 %v893
    %1373 = vmatprep.subr.mxu0 0.0
    %1374 = vmatpush1.msra.mxu0 0.0
    %1375 = vmatprep.subr.mxu0 0.0
    %1376 = vmatpush1.msra.mxu0 0.0
    %1377 = vmatprep.subr.mxu0 0.0
    %1378 = vmatpush1.msra.mxu0 0.0
    %1379 = vmatprep.subr.mxu0 0.0
    %1380 = vmatpush1.msra.mxu0 0.0
    %1381 = vmatprep.subr.mxu0 0.0
    %1382 = vmatpush1.msra.mxu0 0.0
    %1383 = vmatprep.subr.mxu0 0.0
    %1384 = vmatpush1.msra.mxu0 0.0
    %1385 = vmatprep.subr.mxu0 0.0
    %1386 = vmatpush1.msra.mxu0 0.0
    %1387 = vmatprep.subr.mxu0 0.0
    %1388 = vmatpush1.msra.mxu0 0.0
    %1389 = vmatprep.subr.mxu0 0.0
    %1390 = vmatpush1.msra.mxu0 0.0
    %1391 = vmatprep.subr.mxu0 0.0
    %1392 = vmatpush1.msra.mxu0 0.0
    %1393 = vmatprep.subr.mxu0 0.0
    %1394 = vmatpush1.msra.mxu0 0.0
    %1395 = vmatprep.subr.mxu0 0.0
    %1396 = vmatpush1.msra.mxu0 0.0
    %1397 = vmatprep.subr.mxu0 0.0
    %1398 = vmatpush1.msra.mxu0 0.0
    %1399 = vmatprep.subr.mxu0 0.0
    %1400 = vmatpush1.msra.mxu0 0.0
    %1401 = vmatprep.subr.mxu0 0.0
    %1402 = vmatpush1.msra.mxu0 0.0
    %1403 = vmatprep.subr.mxu0 0.0
    %1404 = vmatpush1.msra.mxu0 0.0
    %1405 = vmatprep.subr.mxu0 0.0
    %1406 = vmatpush1.msra.mxu0 0.0
    %1407 = vmatprep.subr.mxu0 0.0
    %1408 = vmatpush1.msra.mxu0 0.0
    %1409 = vmatprep.subr.mxu0 0.0
    %1410 = vmatpush1.msra.mxu0 0.0
    %1411 = vmatprep.subr.mxu0 0.0
    %1412 = vmatpush1.msra.mxu0 0.0
    %1413 = vmatprep.subr.mxu0 0.0
    %1414 = vmatpush1.msra.mxu0 0.0
    %1415 = vmatprep.subr.mxu0 0.0
    %1416 = vmatpush1.msra.mxu0 0.0
    %1417 = vmatprep.subr.mxu0 0.0
    %1418 = vmatpush1.msra.mxu0 0.0
    %1419 = vmatprep.subr.mxu0 0.0
    %1420 = vmatpush1.msra.mxu0 0.0
    %1421 = vmatprep.subr.mxu0 0.0
    %1422 = vmatpush1.msra.mxu0 0.0
    %1423 = vmatprep.subr.mxu0 0.0
    %1424 = vmatpush1.msra.mxu0 0.0
    %1425 = vmatprep.subr.mxu0 0.0
    %1426 = vmatpush1.msra.mxu0 0.0
    %1427 = vmatprep.subr.mxu0 0.0
    %1428 = vmatpush1.msra.mxu0 0.0
    %1429 = vmatprep.mubr.f32.mxu0 0.0
    %1430 = vmatmul.mubr.f32.gmra.mrb[0].mxu0 %v1363
    %v1431 = vpop.f32.mrb[0].mxu0
    %v1432 = vadd.f32 0.0, %v1431
    %v1433 = vpop.f32.mrb[0].mxu0
    %1434 = vdwg.mxu0
    %v1436 = vrot.slane %v1432, 4
    %v1438 = vadd.f32 %v887, %v1436
    %v1439 = vmax.f32 %v1438, 0.0
    %v1441 = vrot.slane %v1439, 4
    %v1442 = vsel %vm160, %v1441, 0
    %1444 = vmatprep.subr.mxu0 0.0
    %1445 = vmatpush1.msra.mxu0 %v890
    %1446 = vmatprep.subr.mxu0 0.0
    %1447 = vmatpush1.msra.mxu0 %v891
    %1448 = vmatprep.subr.mxu0 0.0
    %1449 = vmatpush1.msra.mxu0 %v892
    %1450 = vmatprep.subr.mxu0 0.0
    %1451 = vmatpush1.msra.mxu0 %v893
    %1452 = vmatprep.subr.mxu0 0.0
    %1453 = vmatpush1.msra.mxu0 0.0
    %1454 = vmatprep.subr.mxu0 0.0
    %1455 = vmatpush1.msra.mxu0 0.0
    %1456 = vmatprep.subr.mxu0 0.0
    %1457 = vmatpush1.msra.mxu0 0.0
    %1458 = vmatprep.subr.mxu0 0.0
    %1459 = vmatpush1.msra.mxu0 0.0
    %1460 = vmatprep.subr.mxu0 0.0
    %1461 = vmatpush1.msra.mxu0 0.0
    %1462 = vmatprep.subr.mxu0 0.0
    %1463 = vmatpush1.msra.mxu0 0.0
    %1464 = vmatprep.subr.mxu0 0.0
    %1465 = vmatpush1.msra.mxu0 0.0
    %1466 = vmatprep.subr.mxu0 0.0
    %1467 = vmatpush1.msra.mxu0 0.0
    %1468 = vmatprep.subr.mxu0 0.0
    %1469 = vmatpush1.msra.mxu0 0.0
    %1470 = vmatprep.subr.mxu0 0.0
    %1471 = vmatpush1.msra.mxu0 0.0
    %1472 = vmatprep.subr.mxu0 0.0
    %1473 = vmatpush1.msra.mxu0 0.0
    %1474 = vmatprep.subr.mxu0 0.0
    %1475 = vmatpush1.msra.mxu0 0.0
    %1476 = vmatprep.subr.mxu0 0.0
    %1477 = vmatpush1.msra.mxu0 0.0
    %1478 = vmatprep.subr.mxu0 0.0
    %1479 = vmatpush1.msra.mxu0 0.0
    %1480 = vmatprep.subr.mxu0 0.0
    %1481 = vmatpush1.msra.mxu0 0.0
    %1482 = vmatprep.subr.mxu0 0.0
    %1483 = vmatpush1.msra.mxu0 0.0
    %1484 = vmatprep.subr.mxu0 0.0
    %1485 = vmatpush1.msra.mxu0 0.0
    %1486 = vmatprep.subr.mxu0 0.0
    %1487 = vmatpush1.msra.mxu0 0.0
    %1488 = vmatprep.subr.mxu0 0.0
    %1489 = vmatpush1.msra.mxu0 0.0
    %1490 = vmatprep.subr.mxu0 0.0
    %1491 = vmatpush1.msra.mxu0 0.0
    %1492 = vmatprep.subr.mxu0 0.0
    %1493 = vmatpush1.msra.mxu0 0.0
    %1494 = vmatprep.subr.mxu0 0.0
    %1495 = vmatpush1.msra.mxu0 0.0
    %1496 = vmatprep.subr.mxu0 0.0
    %1497 = vmatpush1.msra.mxu0 0.0
    %1498 = vmatprep.subr.mxu0 0.0
    %1499 = vmatpush1.msra.mxu0 0.0
    %1500 = vmatprep.subr.mxu0 0.0
    %1501 = vmatpush1.msra.mxu0 0.0
    %1502 = vmatprep.subr.mxu0 0.0
    %1503 = vmatpush1.msra.mxu0 0.0
    %1504 = vmatprep.subr.mxu0 0.0
    %1505 = vmatpush1.msra.mxu0 0.0
    %1506 = vmatprep.subr.mxu0 0.0
    %1507 = vmatpush1.msra.mxu0 0.0
    %1508 = vmatprep.mubr.f32.mxu0 0.0
    %1509 = vmatmul.mubr.f32.gmra.mrb[0].mxu0 %v1442
    %v1510 = vpop.f32.mrb[0].mxu0
    %v1511 = vadd.f32 0.0, %v1510
    %v1512 = vpop.f32.mrb[0].mxu0
    %1513 = vdwg.mxu0
    %v1515 = vrot.slane %v1511, 2
    %v1517 = vadd.f32 %v887, %v1515
    %v1518 = vmax.f32 %v1517, 0.0
    %v1519 = vld [vmem:[%s8] sm:$0xff]
    %v1520 = vld [vmem:[%s8 + $0x8] sm:$0xff]
    %v1521 = vld [vmem:[%s8 + $0x10] sm:$0xff]
    %v1522 = vld [vmem:[%s8 + $0x18] sm:$0xff]
    %v1523 = vld [vmem:[#allocation6] sm:$0x1]
    %v1525 = vlaneseq
    %v1526 = vshrl.u32 %v1525, 7
    %v1527 = vsub.s32 0, %v1526
    %v1528 = vrot.slane %v1523, %v1527
    %v1531 = vrot.slane %v1518, 6
    %v1532 = vsel %vm160, %v1531, 0
    %1534 = vmatprep.subr.mxu0 0.0
    %1535 = vmatpush1.msra.mxu0 %v1519
    %1536 = vmatprep.subr.mxu0 0.0
    %1537 = vmatpush1.msra.mxu0 %v1520
    %1538 = vmatprep.subr.mxu0 0.0
    %1539 = vmatpush1.msra.mxu0 %v1521
    %1540 = vmatprep.subr.mxu0 0.0
    %1541 = vmatpush1.msra.mxu0 %v1522
    %1542 = vmatprep.subr.mxu0 0.0
    %1543 = vmatpush1.msra.mxu0 0.0
    %1544 = vmatprep.subr.mxu0 0.0
    %1545 = vmatpush1.msra.mxu0 0.0
    %1546 = vmatprep.subr.mxu0 0.0
    %1547 = vmatpush1.msra.mxu0 0.0
    %1548 = vmatprep.subr.mxu0 0.0
    %1549 = vmatpush1.msra.mxu0 0.0
    %1550 = vmatprep.subr.mxu0 0.0
    %1551 = vmatpush1.msra.mxu0 0.0
    %1552 = vmatprep.subr.mxu0 0.0
    %1553 = vmatpush1.msra.mxu0 0.0
    %1554 = vmatprep.subr.mxu0 0.0
    %1555 = vmatpush1.msra.mxu0 0.0
    %1556 = vmatprep.subr.mxu0 0.0
    %1557 = vmatpush1.msra.mxu0 0.0
    %1558 = vmatprep.subr.mxu0 0.0
    %1559 = vmatpush1.msra.mxu0 0.0
    %1560 = vmatprep.subr.mxu0 0.0
    %1561 = vmatpush1.msra.mxu0 0.0
    %1562 = vmatprep.subr.mxu0 0.0
    %1563 = vmatpush1.msra.mxu0 0.0
    %1564 = vmatprep.subr.mxu0 0.0
    %1565 = vmatpush1.msra.mxu0 0.0
    %1566 = vmatprep.subr.mxu0 0.0
    %1567 = vmatpush1.msra.mxu0 0.0
    %1568 = vmatprep.subr.mxu0 0.0
    %1569 = vmatpush1.msra.mxu0 0.0
    %1570 = vmatprep.subr.mxu0 0.0
    %1571 = vmatpush1.msra.mxu0 0.0
    %1572 = vmatprep.subr.mxu0 0.0
    %1573 = vmatpush1.msra.mxu0 0.0
    %1574 = vmatprep.subr.mxu0 0.0
    %1575 = vmatpush1.msra.mxu0 0.0
    %1576 = vmatprep.subr.mxu0 0.0
    %1577 = vmatpush1.msra.mxu0 0.0
    %1578 = vmatprep.subr.mxu0 0.0
    %1579 = vmatpush1.msra.mxu0 0.0
    %1580 = vmatprep.subr.mxu0 0.0
    %1581 = vmatpush1.msra.mxu0 0.0
    %1582 = vmatprep.subr.mxu0 0.0
    %1583 = vmatpush1.msra.mxu0 0.0
    %1584 = vmatprep.subr.mxu0 0.0
    %1585 = vmatpush1.msra.mxu0 0.0
    %1586 = vmatprep.subr.mxu0 0.0
    %1587 = vmatpush1.msra.mxu0 0.0
    %1588 = vmatprep.subr.mxu0 0.0
    %1589 = vmatpush1.msra.mxu0 0.0
    %1590 = vmatprep.subr.mxu0 0.0
    %1591 = vmatpush1.msra.mxu0 0.0
    %1592 = vmatprep.subr.mxu0 0.0
    %1593 = vmatpush1.msra.mxu0 0.0
    %1594 = vmatprep.subr.mxu0 0.0
    %1595 = vmatpush1.msra.mxu0 0.0
    %1596 = vmatprep.subr.mxu0 0.0
    %1597 = vmatpush1.msra.mxu0 0.0
    %1598 = vmatprep.mubr.f32.mxu0 0.0
    %1599 = vmatmul.mubr.f32.gmra.mrb[0].mxu0 %v1532
    %v1600 = vpop.f32.mrb[0].mxu0
    %v1601 = vadd.f32 %v1528, %v1600
    %v1602 = vpop.f32.mrb[0].mxu0
    %1603 = vdwg.mxu0
    %vm1604 = vcmask 25600
    %1605 = vst.msk [vmem:[#allocation8] sm:$0x3] %vm1604, %v1601
    // Predicated region
    $region50: #{rnn_model_forward.1} parent=1 // pred_check
      _
    $region51: #{rnn_model_forward.1} parent=1 // pred_check_branch
      %1607 = sbr.rel (0) target = $region53
    $region52: #{rnn_model_forward.1} parent=1 // pred_region
      %s1609 = ssub.s32 32, 32
      %1610 = vsyncadd [#allocation5], %s1609
      %s1612 = sshll.u32 [#allocation8], 4
      %s1613 = int_to_ptr.vmem [resolvable:$true] %s1612
      %1615 = dma.vmem_to_hbm [thread:$0]  %s1613, 32, %s10, [#allocation5]
    $region53: #{rnn_model_forward.1} parent=1 // pred_fallthru
      _
    // Predicated region
    $region54: #{rnn_model_forward.1} parent=1 // pred_check
      _
    $region55: #{rnn_model_forward.1} parent=1 // pred_check_branch
      %1617 = sbr.rel (0) target = $region57
    $region56: #{rnn_model_forward.1} parent=1 // pred_region
      %1618 = dma.done [#allocation5], 32
    $region57: #{rnn_model_forward.1} parent=1 // pred_fallthru
      _
    %1619 = vsyncpa [#allocation4], 1
    %1620 = vsyncpa [#allocation7], 1
    %1621 = vsyncpa [#allocation5], 1

</llo_original>
